<compile_context>
chip_gen: v7x
topology: tpu7x:2x2x1
jax: 0.10.0
libtpu: 0.0.40
codegen_flags: <defaults>
</compile_context>

<pallas_src>
import functools

import jax
import jax.numpy as jnp
from jax.experimental import pallas as pl
from jax.experimental.pallas import tpu as pltpu


def _round_up(x, m):
    return ((x + m - 1) // m) * m


# ----------------------------- in-kernel helpers -----------------------------

def _layernorm(x, w, b, n, eps=1e-5):
    """LayerNorm over the last dim where x is zero-padded beyond column n.
    Uses E[x^2]-mu^2 so the zero pad contributes nothing; w/b are zero in the
    pad columns, so the output pad columns stay exactly zero."""
    inv_n = 1.0 / n
    mu = jnp.sum(x, axis=-1, keepdims=True) * inv_n
    ex2 = jnp.sum(x * x, axis=-1, keepdims=True) * inv_n
    var = jnp.maximum(ex2 - mu * mu, 0.0)
    return (x - mu) * jax.lax.rsqrt(var + eps) * w + b


def _rmsnorm(x, w, n, eps=1e-6):
    ms = jnp.sum(x * x, axis=-1, keepdims=True) * (1.0 / n)
    return w * (x * jax.lax.rsqrt(ms + eps))


# --------------------------------- kernel ------------------------------------

def embed_block_kernel(
    # batch-block inputs: (B_blk, L, E_pad)
    t_ref, fx_ref,
    # ln_t / ln_f (1, E_pad)
    ln_t_w, ln_t_b, ln_f_w, ln_f_b,
    # in_linear_t / in_linear_x  (E_pad, H_pad) bf16 + (1, H_pad) f32
    w_t, b_t, w_x, b_x,
    # RMSNorm weights (1, H_pad)
    rn1_t_w, rn2_t_w, rn1_f_w, rn2_f_w,
    # fused per-head MHA projections: (H_pad, nh*dph) bf16 + (1, nh*dph) f32
    w_q, b_q, w_k, b_k, w_v, b_v,
    # fused out projection: (nh*dph, H_pad) bf16 + (1, H_pad) f32
    w_o, b_o,
    # ln1 / ln2 (1, H_pad)
    ln1_w, ln1_b, ln2_w, ln2_b,
    # t_out MLP (padded):  lin0 (H_pad,H_pad)  lin1 (H_pad,E_pad)
    t_w0, t_b0, t_w1, t_b1,
    # fx_out MLP
    f_w0, f_b0, f_w1, f_b1,
    # batch-block outputs: (B_blk, L, E_pad)
    t_out_ref, fx_out_ref,
    *, embed_dim, hid_dim, num_heads, head_dim, head_dim_pad,
):
    f32 = jnp.float32
    bf16 = jnp.bfloat16
    nh = num_heads
    dph = head_dim_pad
    scale = 1.0 / (head_dim ** 0.5)

    B, L, Ep = t_ref.shape
    M = B * L  # tokens in this batch block -> matmul M dimension

    # --- pre-norm on flattened tokens (f32 norms, bf16 MXU operands) ---
    t = _layernorm(t_ref[...].reshape(M, Ep), ln_t_w[...], ln_t_b[...], embed_dim)
    fx = _layernorm(fx_ref[...].reshape(M, Ep), ln_f_w[...], ln_f_b[...], embed_dim)

    t_in = jnp.dot(t.astype(bf16), w_t[...], preferred_element_type=f32) + b_t[...]
    fx_in = jnp.dot(fx.astype(bf16), w_x[...], preferred_element_type=f32) + b_x[...]

    q = _rmsnorm(t_in, rn1_t_w[...], hid_dim) * _rmsnorm(fx_in, rn1_f_w[...], hid_dim)
    k = _rmsnorm(t_in, rn2_t_w[...], hid_dim) * _rmsnorm(fx_in, rn2_f_w[...], hid_dim)
    v = t_in * fx_in

    # --- fused q/k/v projections: one (M, Hp) @ (Hp, nh*dph) matmul each ---
    q_all = (jnp.dot(q.astype(bf16), w_q[...], preferred_element_type=f32)
             + b_q[...]) * scale
    k_all = jnp.dot(k.astype(bf16), w_k[...], preferred_element_type=f32) + b_k[...]
    v_all = jnp.dot(v.astype(bf16), w_v[...], preferred_element_type=f32) + b_v[...]

    # --- attention: static loop over the (tiny) head count, einsums batched
    #     over the batch dimension of the block; head slices are 128-aligned ---
    o_heads = []
    for h in range(nh):
        lo = h * dph
        qh = q_all[:, lo:lo + dph].reshape(B, L, dph).astype(bf16)
        kh = k_all[:, lo:lo + dph].reshape(B, L, dph).astype(bf16)
        vh = v_all[:, lo:lo + dph].reshape(B, L, dph).astype(bf16)

        s = jnp.einsum('bqd,bkd->bqk', qh, kh, preferred_element_type=f32)
        s = s - jnp.max(s, axis=-1, keepdims=True)
        p = jnp.exp(s)
        p = p / jnp.sum(p, axis=-1, keepdims=True)      # exact softmax

        oh = jnp.einsum('bqk,bkd->bqd', p.astype(bf16), vh,
                        preferred_element_type=f32)
        o_heads.append(oh.reshape(M, dph))

    # --- fused merge-heads + output projection: (M, nh*dph) @ (nh*dph, Hp) ---
    o_cat = jnp.concatenate(o_heads, axis=-1)
    att = jnp.dot(o_cat.astype(bf16), w_o[...], preferred_element_type=f32) + b_o[...]

    # --- output branches ---
    t_o = _layernorm(att, ln1_w[...], ln1_b[...], hid_dim)
    fx_o = _layernorm(att, ln2_w[...], ln2_b[...], hid_dim)

    # MLPLinear_res (num_layers=2, assumed form): x = relu(lin0(x)) + x ; lin1(x)
    t_h = jnp.maximum(
        jnp.dot(t_o.astype(bf16), t_w0[...], preferred_element_type=f32) + t_b0[...],
        0.0) + t_o
    t_res = jnp.dot(t_h.astype(bf16), t_w1[...], preferred_element_type=f32) + t_b1[...]

    f_h = jnp.maximum(
        jnp.dot(fx_o.astype(bf16), f_w0[...], preferred_element_type=f32) + f_b0[...],
        0.0) + fx_o
    f_res = jnp.dot(f_h.astype(bf16), f_w1[...], preferred_element_type=f32) + f_b1[...]

    # residual with the post-LayerNorm t / fx (matches the PyTorch forward)
    t_out_ref[...] = (t_res + t).reshape(B, L, Ep)
    fx_out_ref[...] = (f_res + fx).reshape(B, L, Ep)


# ------------------------------ params & wrapper ------------------------------

KERNEL_PARAM_ORDER = [
    "ln_t_w", "ln_t_b", "ln_f_w", "ln_f_b",
    "w_t", "b_t", "w_x", "b_x",
    "rn1_t_w", "rn2_t_w", "rn1_f_w", "rn2_f_w",
    "w_q", "b_q", "w_k", "b_k", "w_v", "b_v",
    "w_o", "b_o",
    "ln1_w", "ln1_b", "ln2_w", "ln2_b",
    "t_w0", "t_b0", "t_w1", "t_b1",
    "f_w0", "f_b0", "f_w1", "f_b1",
]


def init_params(key, embed_dim, hid_dim):
    """Raw (unpadded) params in PyTorch-equivalent math layout (in, out)."""
    def dense(k, fan_in, fan_out):
        k1, k2 = jax.random.split(k)
        bound = 1.0 / (fan_in ** 0.5)
        w = jax.random.uniform(k1, (fan_in, fan_out), jnp.float32, -bound, bound)
        b = jax.random.uniform(k2, (fan_out,), jnp.float32, -bound, bound)
        return w, b

    keys = jax.random.split(key, 8)
    p = {}
    p["ln_t_w"] = jnp.ones((embed_dim,), jnp.float32)
    p["ln_t_b"] = jnp.zeros((embed_dim,), jnp.float32)
    p["ln_f_w"] = jnp.ones((embed_dim,), jnp.float32)
    p["ln_f_b"] = jnp.zeros((embed_dim,), jnp.float32)
    for k in ("rn1_t_w", "rn2_t_w", "rn1_f_w", "rn2_f_w"):
        p[k] = jnp.ones((hid_dim,), jnp.float32)
    p["ln1_w"] = jnp.ones((hid_dim,), jnp.float32)
    p["ln1_b"] = jnp.zeros((hid_dim,), jnp.float32)
    p["ln2_w"] = jnp.ones((hid_dim,), jnp.float32)
    p["ln2_b"] = jnp.zeros((hid_dim,), jnp.float32)
    p["w_t"], p["b_t"] = dense(keys[0], embed_dim, hid_dim)
    p["w_x"], p["b_x"] = dense(keys[1], embed_dim, hid_dim)
    p["in_proj_w"], p["in_proj_b"] = dense(keys[2], hid_dim, 3 * hid_dim)  # [q|k|v]
    p["out_proj_w"], p["out_proj_b"] = dense(keys[3], hid_dim, hid_dim)
    p["t_w0"], p["t_b0"] = dense(keys[4], hid_dim, hid_dim)
    p["t_w1"], p["t_b1"] = dense(keys[5], hid_dim, embed_dim)
    p["f_w0"], p["f_b0"] = dense(keys[6], hid_dim, hid_dim)
    p["f_w1"], p["f_b1"] = dense(keys[7], hid_dim, embed_dim)
    return p


def prepare_params(p, embed_dim, hid_dim, num_heads):
    """Zero-pad to 128-lane dims, pack the per-head q/k/v and out-projection
    weights into single head-concatenated matrices (128-aligned head offsets),
    cast MXU weights to bf16.  Call ONCE at model setup, NOT per forward."""
    E, H, nh = embed_dim, hid_dim, num_heads
    hd = H // nh
    Ep, Hp, dph = _round_up(E, 128), _round_up(H, 128), _round_up(hd, 128)

    def pad_mat(w, rows, cols):
        return jnp.pad(w, ((0, rows - w.shape[0]), (0, cols - w.shape[1]))
                       ).astype(jnp.bfloat16)

    def pad_vec(v, cols):
        return jnp.pad(v.reshape(1, -1), ((0, 0), (0, cols - v.shape[-1]))
                       ).astype(jnp.float32)

    def fused_in(col0):
        # (Hp, nh*dph): head h occupies output lanes [h*dph, h*dph + hd)
        w = p["in_proj_w"][:, col0:col0 + H]
        b = p["in_proj_b"][col0:col0 + H]
        wf = jnp.zeros((Hp, nh * dph), jnp.float32)
        bf_ = jnp.zeros((1, nh * dph), jnp.float32)
        for h in range(nh):
            wf = wf.at[:H, h * dph:h * dph + hd].set(w[:, h * hd:(h + 1) * hd])
            bf_ = bf_.at[0, h * dph:h * dph + hd].set(b[h * hd:(h + 1) * hd])
        return wf.astype(jnp.bfloat16), bf_

    def fused_out(w):
        # (nh*dph, Hp): head h occupies input rows [h*dph, h*dph + hd)
        wf = jnp.zeros((nh * dph, Hp), jnp.float32)
        for h in range(nh):
            wf = wf.at[h * dph:h * dph + hd, :H].set(w[h * hd:(h + 1) * hd, :])
        return wf.astype(jnp.bfloat16)

    out = {}
    out["ln_t_w"], out["ln_t_b"] = pad_vec(p["ln_t_w"], Ep), pad_vec(p["ln_t_b"], Ep)
    out["ln_f_w"], out["ln_f_b"] = pad_vec(p["ln_f_w"], Ep), pad_vec(p["ln_f_b"], Ep)
    out["w_t"], out["b_t"] = pad_mat(p["w_t"], Ep, Hp), pad_vec(p["b_t"], Hp)
    out["w_x"], out["b_x"] = pad_mat(p["w_x"], Ep, Hp), pad_vec(p["b_x"], Hp)
    for k in ("rn1_t_w", "rn2_t_w", "rn1_f_w", "rn2_f_w"):
        out[k] = pad_vec(p[k], Hp)
    out["w_q"], out["b_q"] = fused_in(0)
    out["w_k"], out["b_k"] = fused_in(H)
    out["w_v"], out["b_v"] = fused_in(2 * H)
    out["w_o"], out["b_o"] = fused_out(p["out_proj_w"]), pad_vec(p["out_proj_b"], Hp)
    out["ln1_w"], out["ln1_b"] = pad_vec(p["ln1_w"], Hp), pad_vec(p["ln1_b"], Hp)
    out["ln2_w"], out["ln2_b"] = pad_vec(p["ln2_w"], Hp), pad_vec(p["ln2_b"], Hp)
    out["t_w0"], out["t_b0"] = pad_mat(p["t_w0"], Hp, Hp), pad_vec(p["t_b0"], Hp)
    out["t_w1"], out["t_b1"] = pad_mat(p["t_w1"], Hp, Ep), pad_vec(p["t_b1"], Ep)
    out["f_w0"], out["f_b0"] = pad_mat(p["f_w0"], Hp, Hp), pad_vec(p["f_b0"], Hp)
    out["f_w1"], out["f_b1"] = pad_mat(p["f_w1"], Hp, Ep), pad_vec(p["f_b1"], Ep)
    return out


def embed_block(t, fx, kp, *, embed_dim, hid_dim, num_heads, batch_block=None):
    """t, fx: (L, N, E) seq-first. kp: output of prepare_params (precomputed).
    Returns (t_out, fx_out) with the same shape."""
    L, N, E = t.shape
    assert E == embed_dim
    hd = hid_dim // num_heads
    Ep = _round_up(E, 128)
    dph = _round_up(hd, 128)

    # batch block: fold several batches into the matmul M dimension per step
    if batch_block is None:
        batch_block = min(N, max(1, -(-128 // L)))
    N_pad = _round_up(N, batch_block)
    grid = (N_pad // batch_block,)

    # single copy: transpose fuses with the mandatory embed-dim pad in XLA
    def prep(x):
        x = jnp.transpose(x, (1, 0, 2))                      # (N, L, E)
        return jnp.pad(x, ((0, N_pad - N), (0, 0), (0, Ep - E)))
    t_p, fx_p = prep(t), prep(fx)

    kernel = functools.partial(
        embed_block_kernel, embed_dim=E, hid_dim=hid_dim,
        num_heads=num_heads, head_dim=hd, head_dim_pad=dph)

    io_spec = pl.BlockSpec((batch_block, L, Ep), lambda n: (n, 0, 0))

    def full_spec(a):                                        # whole weight in VMEM
        return pl.BlockSpec(a.shape, lambda n, _nd=a.ndim: (0,) * _nd)

    weight_args = [kp[k] for k in KERNEL_PARAM_ORDER]

    t_out_p, fx_out_p = pl.pallas_call(
        kernel,
        out_shape=(jax.ShapeDtypeStruct((N_pad, L, Ep), jnp.float32),
                   jax.ShapeDtypeStruct((N_pad, L, Ep), jnp.float32)),
        grid=grid,
        in_specs=[io_spec, io_spec] + [full_spec(a) for a in weight_args],
        out_specs=(io_spec, io_spec),
        compiler_params=pltpu.CompilerParams(
            dimension_semantics=("parallel",)),   # batch blocks shard across TCs
    )(t_p, fx_p, *weight_args)

    t_out = jnp.transpose(t_out_p[:N, :, :E], (1, 0, 2))
    fx_out = jnp.transpose(fx_out_p[:N, :, :E], (1, 0, 2))
    return t_out, fx_out


# ----------------------------------- main -------------------------------------

if __name__ == "__main__":
    EMBED_DIM = 32
    HID_DIM = 68          # module default; padded to 128 lanes inside the wrapper
    NUM_HEADS = 2
    SEQ = 8
    BATCH = 2

    key = jax.random.PRNGKey(0)
    k_t, k_fx, k_p = jax.random.split(key, 3)

    t = jax.random.normal(k_t, (SEQ, BATCH, EMBED_DIM), jnp.float32)
    fx = jax.random.normal(k_fx, (SEQ, BATCH, EMBED_DIM), jnp.float32)

    raw_params = init_params(k_p, EMBED_DIM, HID_DIM)
    # weight padding / head packing done ONCE, outside the per-call path
    prepped = prepare_params(raw_params, EMBED_DIM, HID_DIM, NUM_HEADS)
    prepped = jax.tree_util.tree_map(jnp.asarray, prepped)

    fn = jax.jit(functools.partial(
        embed_block, embed_dim=EMBED_DIM, hid_dim=HID_DIM, num_heads=NUM_HEADS))
    t_out, fx_out = fn(t, fx, prepped)
    jax.block_until_ready((t_out, fx_out))

    assert t_out.shape == (SEQ, BATCH, EMBED_DIM)
    assert fx_out.shape == (SEQ, BATCH, EMBED_DIM)
    assert bool(jnp.all(jnp.isfinite(t_out))) and bool(jnp.all(jnp.isfinite(fx_out)))
    print("KERNEL_OK")
</pallas_src>

<mosaic_0001>
module attributes {stable_mosaic.version = 11 : i64} {
  func.func @embed_block_kernel(%arg0: i32, %arg1: memref<2x8x128xf32, #tpu.memory_space<vmem>>, %arg2: memref<2x8x128xf32, #tpu.memory_space<vmem>>, %arg3: memref<1x128xf32, #tpu.memory_space<vmem>>, %arg4: memref<1x128xf32, #tpu.memory_space<vmem>>, %arg5: memref<1x128xf32, #tpu.memory_space<vmem>>, %arg6: memref<1x128xf32, #tpu.memory_space<vmem>>, %arg7: memref<128x128xbf16, #tpu.memory_space<vmem>>, %arg8: memref<1x128xf32, #tpu.memory_space<vmem>>, %arg9: memref<128x128xbf16, #tpu.memory_space<vmem>>, %arg10: memref<1x128xf32, #tpu.memory_space<vmem>>, %arg11: memref<1x128xf32, #tpu.memory_space<vmem>>, %arg12: memref<1x128xf32, #tpu.memory_space<vmem>>, %arg13: memref<1x128xf32, #tpu.memory_space<vmem>>, %arg14: memref<1x128xf32, #tpu.memory_space<vmem>>, %arg15: memref<128x256xbf16, #tpu.memory_space<vmem>>, %arg16: memref<1x256xf32, #tpu.memory_space<vmem>>, %arg17: memref<128x256xbf16, #tpu.memory_space<vmem>>, %arg18: memref<1x256xf32, #tpu.memory_space<vmem>>, %arg19: memref<128x256xbf16, #tpu.memory_space<vmem>>, %arg20: memref<1x256xf32, #tpu.memory_space<vmem>>, %arg21: memref<256x128xbf16, #tpu.memory_space<vmem>>, %arg22: memref<1x128xf32, #tpu.memory_space<vmem>>, %arg23: memref<1x128xf32, #tpu.memory_space<vmem>>, %arg24: memref<1x128xf32, #tpu.memory_space<vmem>>, %arg25: memref<1x128xf32, #tpu.memory_space<vmem>>, %arg26: memref<1x128xf32, #tpu.memory_space<vmem>>, %arg27: memref<128x128xbf16, #tpu.memory_space<vmem>>, %arg28: memref<1x128xf32, #tpu.memory_space<vmem>>, %arg29: memref<128x128xbf16, #tpu.memory_space<vmem>>, %arg30: memref<1x128xf32, #tpu.memory_space<vmem>>, %arg31: memref<128x128xbf16, #tpu.memory_space<vmem>>, %arg32: memref<1x128xf32, #tpu.memory_space<vmem>>, %arg33: memref<128x128xbf16, #tpu.memory_space<vmem>>, %arg34: memref<1x128xf32, #tpu.memory_space<vmem>>, %arg35: memref<2x8x128xf32, #tpu.memory_space<vmem>>, %arg36: memref<2x8x128xf32, #tpu.memory_space<vmem>>) attributes {dimension_semantics = [#tpu.dimension_semantics<parallel>], iteration_bounds = array<i64: 1>, scalar_prefetch = 0 : i64, scratch_operands = 0 : i64, tpu.core_type = #tpu.core_type<tc>, window_params = [{transform_indices = @transform_0, window_bounds = array<i64: 2, 8, 128>}, {transform_indices = @transform_1, window_bounds = array<i64: 2, 8, 128>}, {pipeline_mode = #tpu.pipeline_mode<synchronous>, transform_indices = @transform_2, window_bounds = array<i64: 1, 128>}, {pipeline_mode = #tpu.pipeline_mode<synchronous>, transform_indices = @transform_3, window_bounds = array<i64: 1, 128>}, {pipeline_mode = #tpu.pipeline_mode<synchronous>, transform_indices = @transform_4, window_bounds = array<i64: 1, 128>}, {pipeline_mode = #tpu.pipeline_mode<synchronous>, transform_indices = @transform_5, window_bounds = array<i64: 1, 128>}, {pipeline_mode = #tpu.pipeline_mode<synchronous>, transform_indices = @transform_6, window_bounds = array<i64: 128, 128>}, {pipeline_mode = #tpu.pipeline_mode<synchronous>, transform_indices = @transform_7, window_bounds = array<i64: 1, 128>}, {pipeline_mode = #tpu.pipeline_mode<synchronous>, transform_indices = @transform_8, window_bounds = array<i64: 128, 128>}, {pipeline_mode = #tpu.pipeline_mode<synchronous>, transform_indices = @transform_9, window_bounds = array<i64: 1, 128>}, {pipeline_mode = #tpu.pipeline_mode<synchronous>, transform_indices = @transform_10, window_bounds = array<i64: 1, 128>}, {pipeline_mode = #tpu.pipeline_mode<synchronous>, transform_indices = @transform_11, window_bounds = array<i64: 1, 128>}, {pipeline_mode = #tpu.pipeline_mode<synchronous>, transform_indices = @transform_12, window_bounds = array<i64: 1, 128>}, {pipeline_mode = #tpu.pipeline_mode<synchronous>, transform_indices = @transform_13, window_bounds = array<i64: 1, 128>}, {pipeline_mode = #tpu.pipeline_mode<synchronous>, transform_indices = @transform_14, window_bounds = array<i64: 128, 256>}, {pipeline_mode = #tpu.pipeline_mode<synchronous>, transform_indices = @transform_15, window_bounds = array<i64: 1, 256>}, {pipeline_mode = #tpu.pipeline_mode<synchronous>, transform_indices = @transform_16, window_bounds = array<i64: 128, 256>}, {pipeline_mode = #tpu.pipeline_mode<synchronous>, transform_indices = @transform_17, window_bounds = array<i64: 1, 256>}, {pipeline_mode = #tpu.pipeline_mode<synchronous>, transform_indices = @transform_18, window_bounds = array<i64: 128, 256>}, {pipeline_mode = #tpu.pipeline_mode<synchronous>, transform_indices = @transform_19, window_bounds = array<i64: 1, 256>}, {pipeline_mode = #tpu.pipeline_mode<synchronous>, transform_indices = @transform_20, window_bounds = array<i64: 256, 128>}, {pipeline_mode = #tpu.pipeline_mode<synchronous>, transform_indices = @transform_21, window_bounds = array<i64: 1, 128>}, {pipeline_mode = #tpu.pipeline_mode<synchronous>, transform_indices = @transform_22, window_bounds = array<i64: 1, 128>}, {pipeline_mode = #tpu.pipeline_mode<synchronous>, transform_indices = @transform_23, window_bounds = array<i64: 1, 128>}, {pipeline_mode = #tpu.pipeline_mode<synchronous>, transform_indices = @transform_24, window_bounds = array<i64: 1, 128>}, {pipeline_mode = #tpu.pipeline_mode<synchronous>, transform_indices = @transform_25, window_bounds = array<i64: 1, 128>}, {pipeline_mode = #tpu.pipeline_mode<synchronous>, transform_indices = @transform_26, window_bounds = array<i64: 128, 128>}, {pipeline_mode = #tpu.pipeline_mode<synchronous>, transform_indices = @transform_27, window_bounds = array<i64: 1, 128>}, {pipeline_mode = #tpu.pipeline_mode<synchronous>, transform_indices = @transform_28, window_bounds = array<i64: 128, 128>}, {pipeline_mode = #tpu.pipeline_mode<synchronous>, transform_indices = @transform_29, window_bounds = array<i64: 1, 128>}, {pipeline_mode = #tpu.pipeline_mode<synchronous>, transform_indices = @transform_30, window_bounds = array<i64: 128, 128>}, {pipeline_mode = #tpu.pipeline_mode<synchronous>, transform_indices = @transform_31, window_bounds = array<i64: 1, 128>}, {pipeline_mode = #tpu.pipeline_mode<synchronous>, transform_indices = @transform_32, window_bounds = array<i64: 128, 128>}, {pipeline_mode = #tpu.pipeline_mode<synchronous>, transform_indices = @transform_33, window_bounds = array<i64: 1, 128>}, {transform_indices = @transform_34, window_bounds = array<i64: 2, 8, 128>}, {transform_indices = @transform_35, window_bounds = array<i64: 2, 8, 128>}]} {
    %c0 = arith.constant 0 : index
    %c0_0 = arith.constant 0 : index
    %c0_1 = arith.constant 0 : index
    %0 = vector.load %arg1[%c0, %c0_0, %c0_1] : memref<2x8x128xf32, #tpu.memory_space<vmem>>, vector<2x8x128xf32>
    %1 = vector.shape_cast %0 : vector<2x8x128xf32> to vector<16x128xf32>
    %c0_2 = arith.constant 0 : index
    %c0_3 = arith.constant 0 : index
    %2 = vector.load %arg3[%c0_2, %c0_3] : memref<1x128xf32, #tpu.memory_space<vmem>>, vector<1x128xf32>
    %c0_4 = arith.constant 0 : index
    %c0_5 = arith.constant 0 : index
    %3 = vector.load %arg4[%c0_4, %c0_5] : memref<1x128xf32, #tpu.memory_space<vmem>>, vector<1x128xf32>
    %cst = arith.constant dense<0.000000e+00> : vector<16xf32>
    %4 = vector.multi_reduction <add>, %1, %cst [1] : vector<16x128xf32> to vector<16xf32>
    %5 = vector.shape_cast %4 : vector<16xf32> to vector<16x1xf32>
    %cst_6 = arith.constant 3.125000e-02 : f32
    %6 = vector.broadcast %cst_6 : f32 to vector<16x1xf32>
    %7 = arith.mulf %5, %6 : vector<16x1xf32>
    %8 = arith.mulf %1, %1 : vector<16x128xf32>
    %cst_7 = arith.constant dense<0.000000e+00> : vector<16xf32>
    %9 = vector.multi_reduction <add>, %8, %cst_7 [1] : vector<16x128xf32> to vector<16xf32>
    %10 = vector.shape_cast %9 : vector<16xf32> to vector<16x1xf32>
    %cst_8 = arith.constant 3.125000e-02 : f32
    %11 = vector.broadcast %cst_8 : f32 to vector<16x1xf32>
    %12 = arith.mulf %10, %11 : vector<16x1xf32>
    %13 = arith.mulf %7, %7 : vector<16x1xf32>
    %14 = arith.subf %12, %13 : vector<16x1xf32>
    %cst_9 = arith.constant 0.000000e+00 : f32
    %15 = vector.broadcast %cst_9 : f32 to vector<16x1xf32>
    %16 = arith.maximumf %14, %15 : vector<16x1xf32>
    %17 = vector.broadcast %7 : vector<16x1xf32> to vector<16x128xf32>
    %18 = arith.subf %1, %17 : vector<16x128xf32>
    %cst_10 = arith.constant 9.99999974E-6 : f32
    %19 = vector.broadcast %cst_10 : f32 to vector<16x1xf32>
    %20 = arith.addf %16, %19 : vector<16x1xf32>
    %21 = math.rsqrt %20 : vector<16x1xf32>
    %22 = vector.broadcast %21 : vector<16x1xf32> to vector<16x128xf32>
    %23 = arith.mulf %18, %22 : vector<16x128xf32>
    %24 = vector.broadcast %2 : vector<1x128xf32> to vector<16x128xf32>
    %25 = arith.mulf %23, %24 : vector<16x128xf32>
    %26 = vector.broadcast %3 : vector<1x128xf32> to vector<16x128xf32>
    %27 = arith.addf %25, %26 : vector<16x128xf32>
    %c0_11 = arith.constant 0 : index
    %c0_12 = arith.constant 0 : index
    %c0_13 = arith.constant 0 : index
    %28 = vector.load %arg2[%c0_11, %c0_12, %c0_13] : memref<2x8x128xf32, #tpu.memory_space<vmem>>, vector<2x8x128xf32>
    %29 = vector.shape_cast %28 : vector<2x8x128xf32> to vector<16x128xf32>
    %c0_14 = arith.constant 0 : index
    %c0_15 = arith.constant 0 : index
    %30 = vector.load %arg5[%c0_14, %c0_15] : memref<1x128xf32, #tpu.memory_space<vmem>>, vector<1x128xf32>
    %c0_16 = arith.constant 0 : index
    %c0_17 = arith.constant 0 : index
    %31 = vector.load %arg6[%c0_16, %c0_17] : memref<1x128xf32, #tpu.memory_space<vmem>>, vector<1x128xf32>
    %cst_18 = arith.constant dense<0.000000e+00> : vector<16xf32>
    %32 = vector.multi_reduction <add>, %29, %cst_18 [1] : vector<16x128xf32> to vector<16xf32>
    %33 = vector.shape_cast %32 : vector<16xf32> to vector<16x1xf32>
    %cst_19 = arith.constant 3.125000e-02 : f32
    %34 = vector.broadcast %cst_19 : f32 to vector<16x1xf32>
    %35 = arith.mulf %33, %34 : vector<16x1xf32>
    %36 = arith.mulf %29, %29 : vector<16x128xf32>
    %cst_20 = arith.constant dense<0.000000e+00> : vector<16xf32>
    %37 = vector.multi_reduction <add>, %36, %cst_20 [1] : vector<16x128xf32> to vector<16xf32>
    %38 = vector.shape_cast %37 : vector<16xf32> to vector<16x1xf32>
    %cst_21 = arith.constant 3.125000e-02 : f32
    %39 = vector.broadcast %cst_21 : f32 to vector<16x1xf32>
    %40 = arith.mulf %38, %39 : vector<16x1xf32>
    %41 = arith.mulf %35, %35 : vector<16x1xf32>
    %42 = arith.subf %40, %41 : vector<16x1xf32>
    %cst_22 = arith.constant 0.000000e+00 : f32
    %43 = vector.broadcast %cst_22 : f32 to vector<16x1xf32>
    %44 = arith.maximumf %42, %43 : vector<16x1xf32>
    %45 = vector.broadcast %35 : vector<16x1xf32> to vector<16x128xf32>
    %46 = arith.subf %29, %45 : vector<16x128xf32>
    %cst_23 = arith.constant 9.99999974E-6 : f32
    %47 = vector.broadcast %cst_23 : f32 to vector<16x1xf32>
    %48 = arith.addf %44, %47 : vector<16x1xf32>
    %49 = math.rsqrt %48 : vector<16x1xf32>
    %50 = vector.broadcast %49 : vector<16x1xf32> to vector<16x128xf32>
    %51 = arith.mulf %46, %50 : vector<16x128xf32>
    %52 = vector.broadcast %30 : vector<1x128xf32> to vector<16x128xf32>
    %53 = arith.mulf %51, %52 : vector<16x128xf32>
    %54 = vector.broadcast %31 : vector<1x128xf32> to vector<16x128xf32>
    %55 = arith.addf %53, %54 : vector<16x128xf32>
    %56 = arith.truncf %27 : vector<16x128xf32> to vector<16x128xbf16>
    %c0_24 = arith.constant 0 : index
    %c0_25 = arith.constant 0 : index
    %57 = vector.load %arg7[%c0_24, %c0_25] : memref<128x128xbf16, #tpu.memory_space<vmem>>, vector<128x128xbf16>
    %cst_26 = arith.constant dense<0.000000e+00> : vector<16x128xf32>
    %58 = tpu.matmul %56, %57, %cst_26 {dimension_numbers = #tpu.dot_dimension_numbers<[1], [0], [0], [1], [0, 0, 1, 1], [], []>} : vector<16x128xbf16>, vector<128x128xbf16>, vector<16x128xf32> -> vector<16x128xf32>
    %c0_27 = arith.constant 0 : index
    %c0_28 = arith.constant 0 : index
    %59 = vector.load %arg8[%c0_27, %c0_28] : memref<1x128xf32, #tpu.memory_space<vmem>>, vector<1x128xf32>
    %60 = vector.broadcast %59 : vector<1x128xf32> to vector<16x128xf32>
    %61 = arith.addf %58, %60 : vector<16x128xf32>
    %62 = arith.truncf %55 : vector<16x128xf32> to vector<16x128xbf16>
    %c0_29 = arith.constant 0 : index
    %c0_30 = arith.constant 0 : index
    %63 = vector.load %arg9[%c0_29, %c0_30] : memref<128x128xbf16, #tpu.memory_space<vmem>>, vector<128x128xbf16>
    %cst_31 = arith.constant dense<0.000000e+00> : vector<16x128xf32>
    %64 = tpu.matmul %62, %63, %cst_31 {dimension_numbers = #tpu.dot_dimension_numbers<[1], [0], [0], [1], [0, 0, 1, 1], [], []>} : vector<16x128xbf16>, vector<128x128xbf16>, vector<16x128xf32> -> vector<16x128xf32>
    %c0_32 = arith.constant 0 : index
    %c0_33 = arith.constant 0 : index
    %65 = vector.load %arg10[%c0_32, %c0_33] : memref<1x128xf32, #tpu.memory_space<vmem>>, vector<1x128xf32>
    %66 = vector.broadcast %65 : vector<1x128xf32> to vector<16x128xf32>
    %67 = arith.addf %64, %66 : vector<16x128xf32>
    %c0_34 = arith.constant 0 : index
    %c0_35 = arith.constant 0 : index
    %68 = vector.load %arg11[%c0_34, %c0_35] : memref<1x128xf32, #tpu.memory_space<vmem>>, vector<1x128xf32>
    %69 = arith.mulf %61, %61 : vector<16x128xf32>
    %cst_36 = arith.constant dense<0.000000e+00> : vector<16xf32>
    %70 = vector.multi_reduction <add>, %69, %cst_36 [1] : vector<16x128xf32> to vector<16xf32>
    %71 = vector.shape_cast %70 : vector<16xf32> to vector<16x1xf32>
    %cst_37 = arith.constant 0.0147058824 : f32
    %72 = vector.broadcast %cst_37 : f32 to vector<16x1xf32>
    %73 = arith.mulf %71, %72 : vector<16x1xf32>
    %cst_38 = arith.constant 9.99999997E-7 : f32
    %74 = vector.broadcast %cst_38 : f32 to vector<16x1xf32>
    %75 = arith.addf %73, %74 : vector<16x1xf32>
    %76 = math.rsqrt %75 : vector<16x1xf32>
    %77 = vector.broadcast %76 : vector<16x1xf32> to vector<16x128xf32>
    %78 = arith.mulf %61, %77 : vector<16x128xf32>
    %79 = vector.broadcast %68 : vector<1x128xf32> to vector<16x128xf32>
    %80 = arith.mulf %79, %78 : vector<16x128xf32>
    %c0_39 = arith.constant 0 : index
    %c0_40 = arith.constant 0 : index
    %81 = vector.load %arg13[%c0_39, %c0_40] : memref<1x128xf32, #tpu.memory_space<vmem>>, vector<1x128xf32>
    %82 = arith.mulf %67, %67 : vector<16x128xf32>
    %cst_41 = arith.constant dense<0.000000e+00> : vector<16xf32>
    %83 = vector.multi_reduction <add>, %82, %cst_41 [1] : vector<16x128xf32> to vector<16xf32>
    %84 = vector.shape_cast %83 : vector<16xf32> to vector<16x1xf32>
    %cst_42 = arith.constant 0.0147058824 : f32
    %85 = vector.broadcast %cst_42 : f32 to vector<16x1xf32>
    %86 = arith.mulf %84, %85 : vector<16x1xf32>
    %cst_43 = arith.constant 9.99999997E-7 : f32
    %87 = vector.broadcast %cst_43 : f32 to vector<16x1xf32>
    %88 = arith.addf %86, %87 : vector<16x1xf32>
    %89 = math.rsqrt %88 : vector<16x1xf32>
    %90 = vector.broadcast %89 : vector<16x1xf32> to vector<16x128xf32>
    %91 = arith.mulf %67, %90 : vector<16x128xf32>
    %92 = vector.broadcast %81 : vector<1x128xf32> to vector<16x128xf32>
    %93 = arith.mulf %92, %91 : vector<16x128xf32>
    %94 = arith.mulf %80, %93 : vector<16x128xf32>
    %c0_44 = arith.constant 0 : index
    %c0_45 = arith.constant 0 : index
    %95 = vector.load %arg12[%c0_44, %c0_45] : memref<1x128xf32, #tpu.memory_space<vmem>>, vector<1x128xf32>
    %96 = arith.mulf %61, %61 : vector<16x128xf32>
    %cst_46 = arith.constant dense<0.000000e+00> : vector<16xf32>
    %97 = vector.multi_reduction <add>, %96, %cst_46 [1] : vector<16x128xf32> to vector<16xf32>
    %98 = vector.shape_cast %97 : vector<16xf32> to vector<16x1xf32>
    %cst_47 = arith.constant 0.0147058824 : f32
    %99 = vector.broadcast %cst_47 : f32 to vector<16x1xf32>
    %100 = arith.mulf %98, %99 : vector<16x1xf32>
    %cst_48 = arith.constant 9.99999997E-7 : f32
    %101 = vector.broadcast %cst_48 : f32 to vector<16x1xf32>
    %102 = arith.addf %100, %101 : vector<16x1xf32>
    %103 = math.rsqrt %102 : vector<16x1xf32>
    %104 = vector.broadcast %103 : vector<16x1xf32> to vector<16x128xf32>
    %105 = arith.mulf %61, %104 : vector<16x128xf32>
    %106 = vector.broadcast %95 : vector<1x128xf32> to vector<16x128xf32>
    %107 = arith.mulf %106, %105 : vector<16x128xf32>
    %c0_49 = arith.constant 0 : index
    %c0_50 = arith.constant 0 : index
    %108 = vector.load %arg14[%c0_49, %c0_50] : memref<1x128xf32, #tpu.memory_space<vmem>>, vector<1x128xf32>
    %109 = arith.mulf %67, %67 : vector<16x128xf32>
    %cst_51 = arith.constant dense<0.000000e+00> : vector<16xf32>
    %110 = vector.multi_reduction <add>, %109, %cst_51 [1] : vector<16x128xf32> to vector<16xf32>
    %111 = vector.shape_cast %110 : vector<16xf32> to vector<16x1xf32>
    %cst_52 = arith.constant 0.0147058824 : f32
    %112 = vector.broadcast %cst_52 : f32 to vector<16x1xf32>
    %113 = arith.mulf %111, %112 : vector<16x1xf32>
    %cst_53 = arith.constant 9.99999997E-7 : f32
    %114 = vector.broadcast %cst_53 : f32 to vector<16x1xf32>
    %115 = arith.addf %113, %114 : vector<16x1xf32>
    %116 = math.rsqrt %115 : vector<16x1xf32>
    %117 = vector.broadcast %116 : vector<16x1xf32> to vector<16x128xf32>
    %118 = arith.mulf %67, %117 : vector<16x128xf32>
    %119 = vector.broadcast %108 : vector<1x128xf32> to vector<16x128xf32>
    %120 = arith.mulf %119, %118 : vector<16x128xf32>
    %121 = arith.mulf %107, %120 : vector<16x128xf32>
    %122 = arith.mulf %61, %67 : vector<16x128xf32>
    %123 = arith.truncf %94 : vector<16x128xf32> to vector<16x128xbf16>
    %c0_54 = arith.constant 0 : index
    %c0_55 = arith.constant 0 : index
    %124 = vector.load %arg15[%c0_54, %c0_55] : memref<128x256xbf16, #tpu.memory_space<vmem>>, vector<128x256xbf16>
    %cst_56 = arith.constant dense<0.000000e+00> : vector<16x256xf32>
    %125 = tpu.matmul %123, %124, %cst_56 {dimension_numbers = #tpu.dot_dimension_numbers<[1], [0], [0], [1], [0, 0, 1, 1], [], []>} : vector<16x128xbf16>, vector<128x256xbf16>, vector<16x256xf32> -> vector<16x256xf32>
    %c0_57 = arith.constant 0 : index
    %c0_58 = arith.constant 0 : index
    %126 = vector.load %arg16[%c0_57, %c0_58] : memref<1x256xf32, #tpu.memory_space<vmem>>, vector<1x256xf32>
    %127 = vector.broadcast %126 : vector<1x256xf32> to vector<16x256xf32>
    %128 = arith.addf %125, %127 : vector<16x256xf32>
    %cst_59 = arith.constant 0.171498582 : f32
    %129 = vector.broadcast %cst_59 : f32 to vector<16x256xf32>
    %130 = arith.mulf %128, %129 : vector<16x256xf32>
    %131 = arith.truncf %121 : vector<16x128xf32> to vector<16x128xbf16>
    %c0_60 = arith.constant 0 : index
    %c0_61 = arith.constant 0 : index
    %132 = vector.load %arg17[%c0_60, %c0_61] : memref<128x256xbf16, #tpu.memory_space<vmem>>, vector<128x256xbf16>
    %cst_62 = arith.constant dense<0.000000e+00> : vector<16x256xf32>
    %133 = tpu.matmul %131, %132, %cst_62 {dimension_numbers = #tpu.dot_dimension_numbers<[1], [0], [0], [1], [0, 0, 1, 1], [], []>} : vector<16x128xbf16>, vector<128x256xbf16>, vector<16x256xf32> -> vector<16x256xf32>
    %c0_63 = arith.constant 0 : index
    %c0_64 = arith.constant 0 : index
    %134 = vector.load %arg18[%c0_63, %c0_64] : memref<1x256xf32, #tpu.memory_space<vmem>>, vector<1x256xf32>
    %135 = vector.broadcast %134 : vector<1x256xf32> to vector<16x256xf32>
    %136 = arith.addf %133, %135 : vector<16x256xf32>
    %137 = arith.truncf %122 : vector<16x128xf32> to vector<16x128xbf16>
    %c0_65 = arith.constant 0 : index
    %c0_66 = arith.constant 0 : index
    %138 = vector.load %arg19[%c0_65, %c0_66] : memref<128x256xbf16, #tpu.memory_space<vmem>>, vector<128x256xbf16>
    %cst_67 = arith.constant dense<0.000000e+00> : vector<16x256xf32>
    %139 = tpu.matmul %137, %138, %cst_67 {dimension_numbers = #tpu.dot_dimension_numbers<[1], [0], [0], [1], [0, 0, 1, 1], [], []>} : vector<16x128xbf16>, vector<128x256xbf16>, vector<16x256xf32> -> vector<16x256xf32>
    %c0_68 = arith.constant 0 : index
    %c0_69 = arith.constant 0 : index
    %140 = vector.load %arg20[%c0_68, %c0_69] : memref<1x256xf32, #tpu.memory_space<vmem>>, vector<1x256xf32>
    %141 = vector.broadcast %140 : vector<1x256xf32> to vector<16x256xf32>
    %142 = arith.addf %139, %141 : vector<16x256xf32>
    %143 = vector.extract_strided_slice %130 {offsets = [0, 0], sizes = [16, 128], strides = [1, 1]} : vector<16x256xf32> to vector<16x128xf32>
    %144 = vector.shape_cast %143 : vector<16x128xf32> to vector<2x8x128xf32>
    %145 = arith.truncf %144 : vector<2x8x128xf32> to vector<2x8x128xbf16>
    %146 = vector.extract_strided_slice %136 {offsets = [0, 0], sizes = [16, 128], strides = [1, 1]} : vector<16x256xf32> to vector<16x128xf32>
    %147 = vector.shape_cast %146 : vector<16x128xf32> to vector<2x8x128xf32>
    %148 = arith.truncf %147 : vector<2x8x128xf32> to vector<2x8x128xbf16>
    %149 = vector.extract_strided_slice %142 {offsets = [0, 0], sizes = [16, 128], strides = [1, 1]} : vector<16x256xf32> to vector<16x128xf32>
    %150 = vector.shape_cast %149 : vector<16x128xf32> to vector<2x8x128xf32>
    %151 = arith.truncf %150 : vector<2x8x128xf32> to vector<2x8x128xbf16>
    "tpu.trace_start"() <{level = 10 : i32, message = "bqd,bkd->bqk"}> : () -> ()
    %cst_70 = arith.constant dense<0.000000e+00> : vector<2x8x8xf32>
    %152 = tpu.matmul %145, %148, %cst_70 {dimension_numbers = #tpu.dot_dimension_numbers<[2], [2], [1], [1], [0, 0, 0, 1, 1, 1], [0], [0]>} : vector<2x8x128xbf16>, vector<2x8x128xbf16>, vector<2x8x8xf32> -> vector<2x8x8xf32>
    "tpu.trace_stop"() : () -> ()
    %cst_71 = arith.constant dense<0xFF800000> : vector<2x8xf32>
    %153 = vector.multi_reduction <maximumf>, %152, %cst_71 [2] : vector<2x8x8xf32> to vector<2x8xf32>
    %154 = vector.shape_cast %153 : vector<2x8xf32> to vector<2x8x1xf32>
    %155 = vector.broadcast %154 : vector<2x8x1xf32> to vector<2x8x8xf32>
    %156 = arith.subf %152, %155 : vector<2x8x8xf32>
    %157 = math.exp %156 : vector<2x8x8xf32>
    %cst_72 = arith.constant dense<0.000000e+00> : vector<2x8xf32>
    %158 = vector.multi_reduction <add>, %157, %cst_72 [2] : vector<2x8x8xf32> to vector<2x8xf32>
    %159 = vector.shape_cast %158 : vector<2x8xf32> to vector<2x8x1xf32>
    %160 = vector.broadcast %159 : vector<2x8x1xf32> to vector<2x8x8xf32>
    %161 = arith.divf %157, %160 : vector<2x8x8xf32>
    %162 = arith.truncf %161 : vector<2x8x8xf32> to vector<2x8x8xbf16>
    "tpu.trace_start"() <{level = 10 : i32, message = "bqk,bkd->bqd"}> : () -> ()
    %cst_73 = arith.constant dense<0.000000e+00> : vector<2x8x128xf32>
    %163 = tpu.matmul %162, %151, %cst_73 {dimension_numbers = #tpu.dot_dimension_numbers<[2], [1], [1], [2], [0, 0, 0, 1, 1, 2], [0], [0]>} : vector<2x8x8xbf16>, vector<2x8x128xbf16>, vector<2x8x128xf32> -> vector<2x8x128xf32>
    "tpu.trace_stop"() : () -> ()
    %164 = vector.shape_cast %163 : vector<2x8x128xf32> to vector<16x128xf32>
    %165 = vector.extract_strided_slice %130 {offsets = [0, 128], sizes = [16, 128], strides = [1, 1]} : vector<16x256xf32> to vector<16x128xf32>
    %166 = vector.shape_cast %165 : vector<16x128xf32> to vector<2x8x128xf32>
    %167 = arith.truncf %166 : vector<2x8x128xf32> to vector<2x8x128xbf16>
    %168 = vector.extract_strided_slice %136 {offsets = [0, 128], sizes = [16, 128], strides = [1, 1]} : vector<16x256xf32> to vector<16x128xf32>
    %169 = vector.shape_cast %168 : vector<16x128xf32> to vector<2x8x128xf32>
    %170 = arith.truncf %169 : vector<2x8x128xf32> to vector<2x8x128xbf16>
    %171 = vector.extract_strided_slice %142 {offsets = [0, 128], sizes = [16, 128], strides = [1, 1]} : vector<16x256xf32> to vector<16x128xf32>
    %172 = vector.shape_cast %171 : vector<16x128xf32> to vector<2x8x128xf32>
    %173 = arith.truncf %172 : vector<2x8x128xf32> to vector<2x8x128xbf16>
    "tpu.trace_start"() <{level = 10 : i32, message = "bqd,bkd->bqk"}> : () -> ()
    %cst_74 = arith.constant dense<0.000000e+00> : vector<2x8x8xf32>
    %174 = tpu.matmul %167, %170, %cst_74 {dimension_numbers = #tpu.dot_dimension_numbers<[2], [2], [1], [1], [0, 0, 0, 1, 1, 1], [0], [0]>} : vector<2x8x128xbf16>, vector<2x8x128xbf16>, vector<2x8x8xf32> -> vector<2x8x8xf32>
    "tpu.trace_stop"() : () -> ()
    %cst_75 = arith.constant dense<0xFF800000> : vector<2x8xf32>
    %175 = vector.multi_reduction <maximumf>, %174, %cst_75 [2] : vector<2x8x8xf32> to vector<2x8xf32>
    %176 = vector.shape_cast %175 : vector<2x8xf32> to vector<2x8x1xf32>
    %177 = vector.broadcast %176 : vector<2x8x1xf32> to vector<2x8x8xf32>
    %178 = arith.subf %174, %177 : vector<2x8x8xf32>
    %179 = math.exp %178 : vector<2x8x8xf32>
    %cst_76 = arith.constant dense<0.000000e+00> : vector<2x8xf32>
    %180 = vector.multi_reduction <add>, %179, %cst_76 [2] : vector<2x8x8xf32> to vector<2x8xf32>
    %181 = vector.shape_cast %180 : vector<2x8xf32> to vector<2x8x1xf32>
    %182 = vector.broadcast %181 : vector<2x8x1xf32> to vector<2x8x8xf32>
    %183 = arith.divf %179, %182 : vector<2x8x8xf32>
    %184 = arith.truncf %183 : vector<2x8x8xf32> to vector<2x8x8xbf16>
    "tpu.trace_start"() <{level = 10 : i32, message = "bqk,bkd->bqd"}> : () -> ()
    %cst_77 = arith.constant dense<0.000000e+00> : vector<2x8x128xf32>
    %185 = tpu.matmul %184, %173, %cst_77 {dimension_numbers = #tpu.dot_dimension_numbers<[2], [1], [1], [2], [0, 0, 0, 1, 1, 2], [0], [0]>} : vector<2x8x8xbf16>, vector<2x8x128xbf16>, vector<2x8x128xf32> -> vector<2x8x128xf32>
    "tpu.trace_stop"() : () -> ()
    %186 = vector.shape_cast %185 : vector<2x8x128xf32> to vector<16x128xf32>
    %187 = tpu.concatenate %164, %186 in 1 : vector<16x128xf32>, vector<16x128xf32> -> vector<16x256xf32>
    %188 = arith.truncf %187 : vector<16x256xf32> to vector<16x256xbf16>
    %c0_78 = arith.constant 0 : index
    %c0_79 = arith.constant 0 : index
    %189 = vector.load %arg21[%c0_78, %c0_79] : memref<256x128xbf16, #tpu.memory_space<vmem>>, vector<256x128xbf16>
    %cst_80 = arith.constant dense<0.000000e+00> : vector<16x128xf32>
    %190 = tpu.matmul %188, %189, %cst_80 {dimension_numbers = #tpu.dot_dimension_numbers<[1], [0], [0], [1], [0, 0, 1, 1], [], []>} : vector<16x256xbf16>, vector<256x128xbf16>, vector<16x128xf32> -> vector<16x128xf32>
    %c0_81 = arith.constant 0 : index
    %c0_82 = arith.constant 0 : index
    %191 = vector.load %arg22[%c0_81, %c0_82] : memref<1x128xf32, #tpu.memory_space<vmem>>, vector<1x128xf32>
    %192 = vector.broadcast %191 : vector<1x128xf32> to vector<16x128xf32>
    %193 = arith.addf %190, %192 : vector<16x128xf32>
    %c0_83 = arith.constant 0 : index
    %c0_84 = arith.constant 0 : index
    %194 = vector.load %arg23[%c0_83, %c0_84] : memref<1x128xf32, #tpu.memory_space<vmem>>, vector<1x128xf32>
    %c0_85 = arith.constant 0 : index
    %c0_86 = arith.constant 0 : index
    %195 = vector.load %arg24[%c0_85, %c0_86] : memref<1x128xf32, #tpu.memory_space<vmem>>, vector<1x128xf32>
    %cst_87 = arith.constant dense<0.000000e+00> : vector<16xf32>
    %196 = vector.multi_reduction <add>, %193, %cst_87 [1] : vector<16x128xf32> to vector<16xf32>
    %197 = vector.shape_cast %196 : vector<16xf32> to vector<16x1xf32>
    %cst_88 = arith.constant 0.0147058824 : f32
    %198 = vector.broadcast %cst_88 : f32 to vector<16x1xf32>
    %199 = arith.mulf %197, %198 : vector<16x1xf32>
    %200 = arith.mulf %193, %193 : vector<16x128xf32>
    %cst_89 = arith.constant dense<0.000000e+00> : vector<16xf32>
    %201 = vector.multi_reduction <add>, %200, %cst_89 [1] : vector<16x128xf32> to vector<16xf32>
    %202 = vector.shape_cast %201 : vector<16xf32> to vector<16x1xf32>
    %cst_90 = arith.constant 0.0147058824 : f32
    %203 = vector.broadcast %cst_90 : f32 to vector<16x1xf32>
    %204 = arith.mulf %202, %203 : vector<16x1xf32>
    %205 = arith.mulf %199, %199 : vector<16x1xf32>
    %206 = arith.subf %204, %205 : vector<16x1xf32>
    %cst_91 = arith.constant 0.000000e+00 : f32
    %207 = vector.broadcast %cst_91 : f32 to vector<16x1xf32>
    %208 = arith.maximumf %206, %207 : vector<16x1xf32>
    %209 = vector.broadcast %199 : vector<16x1xf32> to vector<16x128xf32>
    %210 = arith.subf %193, %209 : vector<16x128xf32>
    %cst_92 = arith.constant 9.99999974E-6 : f32
    %211 = vector.broadcast %cst_92 : f32 to vector<16x1xf32>
    %212 = arith.addf %208, %211 : vector<16x1xf32>
    %213 = math.rsqrt %212 : vector<16x1xf32>
    %214 = vector.broadcast %213 : vector<16x1xf32> to vector<16x128xf32>
    %215 = arith.mulf %210, %214 : vector<16x128xf32>
    %216 = vector.broadcast %194 : vector<1x128xf32> to vector<16x128xf32>
    %217 = arith.mulf %215, %216 : vector<16x128xf32>
    %218 = vector.broadcast %195 : vector<1x128xf32> to vector<16x128xf32>
    %219 = arith.addf %217, %218 : vector<16x128xf32>
    %c0_93 = arith.constant 0 : index
    %c0_94 = arith.constant 0 : index
    %220 = vector.load %arg25[%c0_93, %c0_94] : memref<1x128xf32, #tpu.memory_space<vmem>>, vector<1x128xf32>
    %c0_95 = arith.constant 0 : index
    %c0_96 = arith.constant 0 : index
    %221 = vector.load %arg26[%c0_95, %c0_96] : memref<1x128xf32, #tpu.memory_space<vmem>>, vector<1x128xf32>
    %cst_97 = arith.constant dense<0.000000e+00> : vector<16xf32>
    %222 = vector.multi_reduction <add>, %193, %cst_97 [1] : vector<16x128xf32> to vector<16xf32>
    %223 = vector.shape_cast %222 : vector<16xf32> to vector<16x1xf32>
    %cst_98 = arith.constant 0.0147058824 : f32
    %224 = vector.broadcast %cst_98 : f32 to vector<16x1xf32>
    %225 = arith.mulf %223, %224 : vector<16x1xf32>
    %226 = arith.mulf %193, %193 : vector<16x128xf32>
    %cst_99 = arith.constant dense<0.000000e+00> : vector<16xf32>
    %227 = vector.multi_reduction <add>, %226, %cst_99 [1] : vector<16x128xf32> to vector<16xf32>
    %228 = vector.shape_cast %227 : vector<16xf32> to vector<16x1xf32>
    %cst_100 = arith.constant 0.0147058824 : f32
    %229 = vector.broadcast %cst_100 : f32 to vector<16x1xf32>
    %230 = arith.mulf %228, %229 : vector<16x1xf32>
    %231 = arith.mulf %225, %225 : vector<16x1xf32>
    %232 = arith.subf %230, %231 : vector<16x1xf32>
    %cst_101 = arith.constant 0.000000e+00 : f32
    %233 = vector.broadcast %cst_101 : f32 to vector<16x1xf32>
    %234 = arith.maximumf %232, %233 : vector<16x1xf32>
    %235 = vector.broadcast %225 : vector<16x1xf32> to vector<16x128xf32>
    %236 = arith.subf %193, %235 : vector<16x128xf32>
    %cst_102 = arith.constant 9.99999974E-6 : f32
    %237 = vector.broadcast %cst_102 : f32 to vector<16x1xf32>
    %238 = arith.addf %234, %237 : vector<16x1xf32>
    %239 = math.rsqrt %238 : vector<16x1xf32>
    %240 = vector.broadcast %239 : vector<16x1xf32> to vector<16x128xf32>
    %241 = arith.mulf %236, %240 : vector<16x128xf32>
    %242 = vector.broadcast %220 : vector<1x128xf32> to vector<16x128xf32>
    %243 = arith.mulf %241, %242 : vector<16x128xf32>
    %244 = vector.broadcast %221 : vector<1x128xf32> to vector<16x128xf32>
    %245 = arith.addf %243, %244 : vector<16x128xf32>
    %246 = arith.truncf %219 : vector<16x128xf32> to vector<16x128xbf16>
    %c0_103 = arith.constant 0 : index
    %c0_104 = arith.constant 0 : index
    %247 = vector.load %arg27[%c0_103, %c0_104] : memref<128x128xbf16, #tpu.memory_space<vmem>>, vector<128x128xbf16>
    %cst_105 = arith.constant dense<0.000000e+00> : vector<16x128xf32>
    %248 = tpu.matmul %246, %247, %cst_105 {dimension_numbers = #tpu.dot_dimension_numbers<[1], [0], [0], [1], [0, 0, 1, 1], [], []>} : vector<16x128xbf16>, vector<128x128xbf16>, vector<16x128xf32> -> vector<16x128xf32>
    %c0_106 = arith.constant 0 : index
    %c0_107 = arith.constant 0 : index
    %249 = vector.load %arg28[%c0_106, %c0_107] : memref<1x128xf32, #tpu.memory_space<vmem>>, vector<1x128xf32>
    %250 = vector.broadcast %249 : vector<1x128xf32> to vector<16x128xf32>
    %251 = arith.addf %248, %250 : vector<16x128xf32>
    %cst_108 = arith.constant 0.000000e+00 : f32
    %252 = vector.broadcast %cst_108 : f32 to vector<16x128xf32>
    %253 = arith.maximumf %251, %252 : vector<16x128xf32>
    %254 = arith.addf %253, %219 : vector<16x128xf32>
    %255 = arith.truncf %254 : vector<16x128xf32> to vector<16x128xbf16>
    %c0_109 = arith.constant 0 : index
    %c0_110 = arith.constant 0 : index
    %256 = vector.load %arg29[%c0_109, %c0_110] : memref<128x128xbf16, #tpu.memory_space<vmem>>, vector<128x128xbf16>
    %cst_111 = arith.constant dense<0.000000e+00> : vector<16x128xf32>
    %257 = tpu.matmul %255, %256, %cst_111 {dimension_numbers = #tpu.dot_dimension_numbers<[1], [0], [0], [1], [0, 0, 1, 1], [], []>} : vector<16x128xbf16>, vector<128x128xbf16>, vector<16x128xf32> -> vector<16x128xf32>
    %c0_112 = arith.constant 0 : index
    %c0_113 = arith.constant 0 : index
    %258 = vector.load %arg30[%c0_112, %c0_113] : memref<1x128xf32, #tpu.memory_space<vmem>>, vector<1x128xf32>
    %259 = vector.broadcast %258 : vector<1x128xf32> to vector<16x128xf32>
    %260 = arith.addf %257, %259 : vector<16x128xf32>
    %261 = arith.truncf %245 : vector<16x128xf32> to vector<16x128xbf16>
    %c0_114 = arith.constant 0 : index
    %c0_115 = arith.constant 0 : index
    %262 = vector.load %arg31[%c0_114, %c0_115] : memref<128x128xbf16, #tpu.memory_space<vmem>>, vector<128x128xbf16>
    %cst_116 = arith.constant dense<0.000000e+00> : vector<16x128xf32>
    %263 = tpu.matmul %261, %262, %cst_116 {dimension_numbers = #tpu.dot_dimension_numbers<[1], [0], [0], [1], [0, 0, 1, 1], [], []>} : vector<16x128xbf16>, vector<128x128xbf16>, vector<16x128xf32> -> vector<16x128xf32>
    %c0_117 = arith.constant 0 : index
    %c0_118 = arith.constant 0 : index
    %264 = vector.load %arg32[%c0_117, %c0_118] : memref<1x128xf32, #tpu.memory_space<vmem>>, vector<1x128xf32>
    %265 = vector.broadcast %264 : vector<1x128xf32> to vector<16x128xf32>
    %266 = arith.addf %263, %265 : vector<16x128xf32>
    %cst_119 = arith.constant 0.000000e+00 : f32
    %267 = vector.broadcast %cst_119 : f32 to vector<16x128xf32>
    %268 = arith.maximumf %266, %267 : vector<16x128xf32>
    %269 = arith.addf %268, %245 : vector<16x128xf32>
    %270 = arith.truncf %269 : vector<16x128xf32> to vector<16x128xbf16>
    %c0_120 = arith.constant 0 : index
    %c0_121 = arith.constant 0 : index
    %271 = vector.load %arg33[%c0_120, %c0_121] : memref<128x128xbf16, #tpu.memory_space<vmem>>, vector<128x128xbf16>
    %cst_122 = arith.constant dense<0.000000e+00> : vector<16x128xf32>
    %272 = tpu.matmul %270, %271, %cst_122 {dimension_numbers = #tpu.dot_dimension_numbers<[1], [0], [0], [1], [0, 0, 1, 1], [], []>} : vector<16x128xbf16>, vector<128x128xbf16>, vector<16x128xf32> -> vector<16x128xf32>
    %c0_123 = arith.constant 0 : index
    %c0_124 = arith.constant 0 : index
    %273 = vector.load %arg34[%c0_123, %c0_124] : memref<1x128xf32, #tpu.memory_space<vmem>>, vector<1x128xf32>
    %274 = vector.broadcast %273 : vector<1x128xf32> to vector<16x128xf32>
    %275 = arith.addf %272, %274 : vector<16x128xf32>
    %276 = arith.addf %260, %27 : vector<16x128xf32>
    %277 = vector.shape_cast %276 : vector<16x128xf32> to vector<2x8x128xf32>
    %c0_125 = arith.constant 0 : index
    %c0_126 = arith.constant 0 : index
    %c0_127 = arith.constant 0 : index
    %278 = vector.load %arg35[%c0_125, %c0_126, %c0_127] : memref<2x8x128xf32, #tpu.memory_space<vmem>>, vector<2x8x128xf32>
    tpu.vector_store %arg35[%c0_125, %c0_126, %c0_127], %277 {strides = array<i32>} : memref<2x8x128xf32, #tpu.memory_space<vmem>>, vector<2x8x128xf32>,
    %279 = arith.addf %275, %55 : vector<16x128xf32>
    %280 = vector.shape_cast %279 : vector<16x128xf32> to vector<2x8x128xf32>
    %c0_128 = arith.constant 0 : index
    %c0_129 = arith.constant 0 : index
    %c0_130 = arith.constant 0 : index
    %281 = vector.load %arg36[%c0_128, %c0_129, %c0_130] : memref<2x8x128xf32, #tpu.memory_space<vmem>>, vector<2x8x128xf32>
    tpu.vector_store %arg36[%c0_128, %c0_129, %c0_130], %280 {strides = array<i32>} : memref<2x8x128xf32, #tpu.memory_space<vmem>>, vector<2x8x128xf32>,
    return
  }
  func.func @transform_0(%arg0: i32) -> (i32, i32, i32) {
    %c0_i32 = arith.constant 0 : i32
    %c0_i32_0 = arith.constant 0 : i32
    %c0_i32_1 = arith.constant 0 : i32
    return %arg0, %c0_i32, %c0_i32_0 : i32, i32, i32
  }
  func.func @transform_1(%arg0: i32) -> (i32, i32, i32) {
    %c0_i32 = arith.constant 0 : i32
    %c0_i32_0 = arith.constant 0 : i32
    %c0_i32_1 = arith.constant 0 : i32
    return %arg0, %c0_i32, %c0_i32_0 : i32, i32, i32
  }
  func.func @transform_2(%arg0: i32) -> (i32, i32) {
    %c0_i32 = arith.constant 0 : i32
    %c0_i32_0 = arith.constant 0 : i32
    %c0_i32_1 = arith.constant 0 : i32
    return %c0_i32, %c0_i32_0 : i32, i32
  }
  func.func @transform_3(%arg0: i32) -> (i32, i32) {
    %c0_i32 = arith.constant 0 : i32
    %c0_i32_0 = arith.constant 0 : i32
    %c0_i32_1 = arith.constant 0 : i32
    return %c0_i32, %c0_i32_0 : i32, i32
  }
  func.func @transform_4(%arg0: i32) -> (i32, i32) {
    %c0_i32 = arith.constant 0 : i32
    %c0_i32_0 = arith.constant 0 : i32
    %c0_i32_1 = arith.constant 0 : i32
    return %c0_i32, %c0_i32_0 : i32, i32
  }
  func.func @transform_5(%arg0: i32) -> (i32, i32) {
    %c0_i32 = arith.constant 0 : i32
    %c0_i32_0 = arith.constant 0 : i32
    %c0_i32_1 = arith.constant 0 : i32
    return %c0_i32, %c0_i32_0 : i32, i32
  }
  func.func @transform_6(%arg0: i32) -> (i32, i32) {
    %c0_i32 = arith.constant 0 : i32
    %c0_i32_0 = arith.constant 0 : i32
    %c0_i32_1 = arith.constant 0 : i32
    return %c0_i32, %c0_i32_0 : i32, i32
  }
  func.func @transform_7(%arg0: i32) -> (i32, i32) {
    %c0_i32 = arith.constant 0 : i32
    %c0_i32_0 = arith.constant 0 : i32
    %c0_i32_1 = arith.constant 0 : i32
    return %c0_i32, %c0_i32_0 : i32, i32
  }
  func.func @transform_8(%arg0: i32) -> (i32, i32) {
    %c0_i32 = arith.constant 0 : i32
    %c0_i32_0 = arith.constant 0 : i32
    %c0_i32_1 = arith.constant 0 : i32
    return %c0_i32, %c0_i32_0 : i32, i32
  }
  func.func @transform_9(%arg0: i32) -> (i32, i32) {
    %c0_i32 = arith.constant 0 : i32
    %c0_i32_0 = arith.constant 0 : i32
    %c0_i32_1 = arith.constant 0 : i32
    return %c0_i32, %c0_i32_0 : i32, i32
  }
  func.func @transform_10(%arg0: i32) -> (i32, i32) {
    %c0_i32 = arith.constant 0 : i32
    %c0_i32_0 = arith.constant 0 : i32
    %c0_i32_1 = arith.constant 0 : i32
    return %c0_i32, %c0_i32_0 : i32, i32
  }
  func.func @transform_11(%arg0: i32) -> (i32, i32) {
    %c0_i32 = arith.constant 0 : i32
    %c0_i32_0 = arith.constant 0 : i32
    %c0_i32_1 = arith.constant 0 : i32
    return %c0_i32, %c0_i32_0 : i32, i32
  }
  func.func @transform_12(%arg0: i32) -> (i32, i32) {
    %c0_i32 = arith.constant 0 : i32
    %c0_i32_0 = arith.constant 0 : i32
    %c0_i32_1 = arith.constant 0 : i32
    return %c0_i32, %c0_i32_0 : i32, i32
  }
  func.func @transform_13(%arg0: i32) -> (i32, i32) {
    %c0_i32 = arith.constant 0 : i32
    %c0_i32_0 = arith.constant 0 : i32
    %c0_i32_1 = arith.constant 0 : i32
    return %c0_i32, %c0_i32_0 : i32, i32
  }
  func.func @transform_14(%arg0: i32) -> (i32, i32) {
    %c0_i32 = arith.constant 0 : i32
    %c0_i32_0 = arith.constant 0 : i32
    %c0_i32_1 = arith.constant 0 : i32
    return %c0_i32, %c0_i32_0 : i32, i32
  }
  func.func @transform_15(%arg0: i32) -> (i32, i32) {
    %c0_i32 = arith.constant 0 : i32
    %c0_i32_0 = arith.constant 0 : i32
    %c0_i32_1 = arith.constant 0 : i32
    return %c0_i32, %c0_i32_0 : i32, i32
  }
  func.func @transform_16(%arg0: i32) -> (i32, i32) {
    %c0_i32 = arith.constant 0 : i32
    %c0_i32_0 = arith.constant 0 : i32
    %c0_i32_1 = arith.constant 0 : i32
    return %c0_i32, %c0_i32_0 : i32, i32
  }
  func.func @transform_17(%arg0: i32) -> (i32, i32) {
    %c0_i32 = arith.constant 0 : i32
    %c0_i32_0 = arith.constant 0 : i32
    %c0_i32_1 = arith.constant 0 : i32
    return %c0_i32, %c0_i32_0 : i32, i32
  }
  func.func @transform_18(%arg0: i32) -> (i32, i32) {
    %c0_i32 = arith.constant 0 : i32
    %c0_i32_0 = arith.constant 0 : i32
    %c0_i32_1 = arith.constant 0 : i32
    return %c0_i32, %c0_i32_0 : i32, i32
  }
  func.func @transform_19(%arg0: i32) -> (i32, i32) {
    %c0_i32 = arith.constant 0 : i32
    %c0_i32_0 = arith.constant 0 : i32
    %c0_i32_1 = arith.constant 0 : i32
    return %c0_i32, %c0_i32_0 : i32, i32
  }
  func.func @transform_20(%arg0: i32) -> (i32, i32) {
    %c0_i32 = arith.constant 0 : i32
    %c0_i32_0 = arith.constant 0 : i32
    %c0_i32_1 = arith.constant 0 : i32
    return %c0_i32, %c0_i32_0 : i32, i32
  }
  func.func @transform_21(%arg0: i32) -> (i32, i32) {
    %c0_i32 = arith.constant 0 : i32
    %c0_i32_0 = arith.constant 0 : i32
    %c0_i32_1 = arith.constant 0 : i32
    return %c0_i32, %c0_i32_0 : i32, i32
  }
  func.func @transform_22(%arg0: i32) -> (i32, i32) {
    %c0_i32 = arith.constant 0 : i32
    %c0_i32_0 = arith.constant 0 : i32
    %c0_i32_1 = arith.constant 0 : i32
    return %c0_i32, %c0_i32_0 : i32, i32
  }
  func.func @transform_23(%arg0: i32) -> (i32, i32) {
    %c0_i32 = arith.constant 0 : i32
    %c0_i32_0 = arith.constant 0 : i32
    %c0_i32_1 = arith.constant 0 : i32
    return %c0_i32, %c0_i32_0 : i32, i32
  }
  func.func @transform_24(%arg0: i32) -> (i32, i32) {
    %c0_i32 = arith.constant 0 : i32
    %c0_i32_0 = arith.constant 0 : i32
    %c0_i32_1 = arith.constant 0 : i32
    return %c0_i32, %c0_i32_0 : i32, i32
  }
  func.func @transform_25(%arg0: i32) -> (i32, i32) {
    %c0_i32 = arith.constant 0 : i32
    %c0_i32_0 = arith.constant 0 : i32
    %c0_i32_1 = arith.constant 0 : i32
    return %c0_i32, %c0_i32_0 : i32, i32
  }
  func.func @transform_26(%arg0: i32) -> (i32, i32) {
    %c0_i32 = arith.constant 0 : i32
    %c0_i32_0 = arith.constant 0 : i32
    %c0_i32_1 = arith.constant 0 : i32
    return %c0_i32, %c0_i32_0 : i32, i32
  }
  func.func @transform_27(%arg0: i32) -> (i32, i32) {
    %c0_i32 = arith.constant 0 : i32
    %c0_i32_0 = arith.constant 0 : i32
    %c0_i32_1 = arith.constant 0 : i32
    return %c0_i32, %c0_i32_0 : i32, i32
  }
  func.func @transform_28(%arg0: i32) -> (i32, i32) {
    %c0_i32 = arith.constant 0 : i32
    %c0_i32_0 = arith.constant 0 : i32
    %c0_i32_1 = arith.constant 0 : i32
    return %c0_i32, %c0_i32_0 : i32, i32
  }
  func.func @transform_29(%arg0: i32) -> (i32, i32) {
    %c0_i32 = arith.constant 0 : i32
    %c0_i32_0 = arith.constant 0 : i32
    %c0_i32_1 = arith.constant 0 : i32
    return %c0_i32, %c0_i32_0 : i32, i32
  }
  func.func @transform_30(%arg0: i32) -> (i32, i32) {
    %c0_i32 = arith.constant 0 : i32
    %c0_i32_0 = arith.constant 0 : i32
    %c0_i32_1 = arith.constant 0 : i32
    return %c0_i32, %c0_i32_0 : i32, i32
  }
  func.func @transform_31(%arg0: i32) -> (i32, i32) {
    %c0_i32 = arith.constant 0 : i32
    %c0_i32_0 = arith.constant 0 : i32
    %c0_i32_1 = arith.constant 0 : i32
    return %c0_i32, %c0_i32_0 : i32, i32
  }
  func.func @transform_32(%arg0: i32) -> (i32, i32) {
    %c0_i32 = arith.constant 0 : i32
    %c0_i32_0 = arith.constant 0 : i32
    %c0_i32_1 = arith.constant 0 : i32
    return %c0_i32, %c0_i32_0 : i32, i32
  }
  func.func @transform_33(%arg0: i32) -> (i32, i32) {
    %c0_i32 = arith.constant 0 : i32
    %c0_i32_0 = arith.constant 0 : i32
    %c0_i32_1 = arith.constant 0 : i32
    return %c0_i32, %c0_i32_0 : i32, i32
  }
  func.func @transform_34(%arg0: i32) -> (i32, i32, i32) {
    %c0_i32 = arith.constant 0 : i32
    %c0_i32_0 = arith.constant 0 : i32
    %c0_i32_1 = arith.constant 0 : i32
    return %arg0, %c0_i32, %c0_i32_0 : i32, i32, i32
  }
  func.func @transform_35(%arg0: i32) -> (i32, i32, i32) {
    %c0_i32 = arith.constant 0 : i32
    %c0_i32_0 = arith.constant 0 : i32
    %c0_i32_1 = arith.constant 0 : i32
    return %arg0, %c0_i32, %c0_i32_0 : i32, i32, i32
  }
}

</mosaic_0001>

<llo_original>
// kernel: embed_block.1
$region0: #{embed_block.1}
  #allocation0 [shape = 'u32[]', space=smem, size = 0x4, offset = 0x4, fixed_abs, tag = 'smem constant byte address 0x4 - core index']
  #allocation1 [shape = 'u32[144,128]{1,0:T(1,128)}', space=vmem, size = 0x12000, scoped, tag = 'internal scratch']
  %s0 = inlined_call_operand.smem [shape: u32[36], index: -1, kind: input, shape index: {}]
  %s1 = sld [smem:[%s0]]
  %s2 = scalar_lea.smem %s0, 1
  %s3 = sld [smem:[%s2]]
  %s4 = scalar_lea.smem %s0, 2
  %s5 = sld [smem:[%s4]]
  %s6 = scalar_lea.smem %s0, 3
  %s7 = sld [smem:[%s6]]
  %s8 = scalar_lea.smem %s0, 4
  %s9 = sld [smem:[%s8]]
  %s10 = scalar_lea.smem %s0, 5
  %s11 = sld [smem:[%s10]]
  %s12 = scalar_lea.smem %s0, 6
  %s13 = sld [smem:[%s12]]
  %s14 = scalar_lea.smem %s0, 7
  %s15 = sld [smem:[%s14]]
  %s16 = scalar_lea.smem %s0, 8
  %s17 = sld [smem:[%s16]]
  %s18 = scalar_lea.smem %s0, 9
  %s19 = sld [smem:[%s18]]
  %s20 = scalar_lea.smem %s0, 10
  %s21 = sld [smem:[%s20]]
  %s22 = scalar_lea.smem %s0, 11
  %s23 = sld [smem:[%s22]]
  %s24 = scalar_lea.smem %s0, 12
  %s25 = sld [smem:[%s24]]
  %s26 = scalar_lea.smem %s0, 13
  %s27 = sld [smem:[%s26]]
  %s28 = scalar_lea.smem %s0, 14
  %s29 = sld [smem:[%s28]]
  %s30 = scalar_lea.smem %s0, 15
  %s31 = sld [smem:[%s30]]
  %s32 = scalar_lea.smem %s0, 16
  %s33 = sld [smem:[%s32]]
  %s34 = scalar_lea.smem %s0, 17
  %s35 = sld [smem:[%s34]]
  %s36 = scalar_lea.smem %s0, 18
  %s37 = sld [smem:[%s36]]
  %s38 = scalar_lea.smem %s0, 19
  %s39 = sld [smem:[%s38]]
  %s40 = scalar_lea.smem %s0, 20
  %s41 = sld [smem:[%s40]]
  %s42 = scalar_lea.smem %s0, 21
  %s43 = sld [smem:[%s42]]
  %s44 = scalar_lea.smem %s0, 22
  %s45 = sld [smem:[%s44]]
  %s46 = scalar_lea.smem %s0, 23
  %s47 = sld [smem:[%s46]]
  %s48 = scalar_lea.smem %s0, 24
  %s49 = sld [smem:[%s48]]
  %s50 = scalar_lea.smem %s0, 25
  %s51 = sld [smem:[%s50]]
  %s52 = scalar_lea.smem %s0, 26
  %s53 = sld [smem:[%s52]]
  %s54 = scalar_lea.smem %s0, 27
  %s55 = sld [smem:[%s54]]
  %s56 = scalar_lea.smem %s0, 28
  %s57 = sld [smem:[%s56]]
  %s58 = scalar_lea.smem %s0, 29
  %s59 = sld [smem:[%s58]]
  %s60 = scalar_lea.smem %s0, 30
  %s61 = sld [smem:[%s60]]
  %s62 = scalar_lea.smem %s0, 31
  %s63 = sld [smem:[%s62]]
  %s64 = scalar_lea.smem %s0, 32
  %s65 = sld [smem:[%s64]]
  %s66 = scalar_lea.smem %s0, 33
  %s67 = sld [smem:[%s66]]
  %s68 = scalar_lea.smem %s0, 34
  %s69 = sld [smem:[%s68]]
  %s70 = scalar_lea.smem %s0, 35
  %s71 = sld [smem:[%s70]]
  %72 = xla_tuple %s69, %s71
  %s73 = sld [smem:[#allocation0]]
  $region186: #{embed_block.1} parent=0
    _
  %s75 = ssub.s32 1, %s73
  %s76 = scalar_select 0, %s75, %s73
  $region1: #{embed_block.1} parent=0
    #allocation2 [shape = 'u8[32768]{0}', space=vmem, size = 0x8000, scoped, tag = 'input window, operand 8, single buffered']
    #allocation3 [shape = 's32[1]{0}', space=sflag, size = 0x4, scoped, tag = 'scoped memory for embed_block.1']
    #allocation4 [shape = 'u8[65536]{0}', space=vmem, size = 0x10000, scoped, tag = 'input window, operand 16, single buffered']
    #allocation5 [shape = 's32[1]{0}', space=sflag, size = 0x4, scoped, tag = 'scoped memory for embed_block.1']
    #allocation6 [shape = 'u8[65536]{0}', space=vmem, size = 0x10000, scoped, tag = 'input window, operand 18, single buffered']
    #allocation7 [shape = 'u8[65536]{0}', space=vmem, size = 0x10000, scoped, tag = 'input window, operand 20, single buffered']
    #allocation8 [shape = 's32[1]{0}', space=sflag, size = 0x4, scoped, tag = 'scoped memory for embed_block.1']
    #allocation9 [shape = 'u8[32768]{0}', space=vmem, size = 0x8000, scoped, tag = 'input window, operand 26, single buffered']
    #allocation10 [shape = 'u8[32768]{0}', space=vmem, size = 0x8000, scoped, tag = 'input window, operand 28, single buffered']
    #allocation11 [shape = 's32[1]{0}', space=sflag, size = 0x4, scoped, tag = 'scoped memory for embed_block.1']
    #allocation12 [shape = 'u8[32768]{0}', space=vmem, size = 0x8000, scoped, tag = 'input window, operand 30, single buffered']
    #allocation13 [shape = 'u8[32768]{0}', space=vmem, size = 0x8000, scoped, tag = 'input window, operand 32, single buffered']
    #allocation14 [shape = 's32[1]{0}', space=sflag, size = 0x4, scoped, tag = 'scoped memory for embed_block.1']
    %77 = vsyncpa [#allocation3], 0
    %78 = vsyncpa [#allocation5], 0
    %79 = vsyncpa [#allocation8], 0
    %80 = vsyncpa [#allocation11], 0
    %81 = vsyncpa [#allocation14], 0
    // Predicated region
    $region2: #{embed_block.1} parent=1 // pred_check
      _
    $region3: #{embed_block.1} parent=1 // pred_check_branch
      %83 = sbr.rel (0) target = $region5
    $region4: #{embed_block.1} parent=1 // pred_region
      _
    $region5: #{embed_block.1} parent=1 // pred_fallthru
      _
    // Predicated region
    $region6: #{embed_block.1} parent=1 // pred_check
      _
    $region7: #{embed_block.1} parent=1 // pred_check_branch
      %85 = sbr.rel (0) target = $region9
    $region8: #{embed_block.1} parent=1 // pred_region
      _
    $region9: #{embed_block.1} parent=1 // pred_fallthru
      _
    // Predicated region
    $region10: #{embed_block.1} parent=1 // pred_check
      _
    $region11: #{embed_block.1} parent=1 // pred_check_branch
      %87 = sbr.rel (0) target = $region13
    $region12: #{embed_block.1} parent=1 // pred_region
      _
    $region13: #{embed_block.1} parent=1 // pred_fallthru
      _
    // Predicated region
    $region14: #{embed_block.1} parent=1 // pred_check
      _
    $region15: #{embed_block.1} parent=1 // pred_check_branch
      %89 = sbr.rel (0) target = $region17
    $region16: #{embed_block.1} parent=1 // pred_region
      _
    $region17: #{embed_block.1} parent=1 // pred_fallthru
      _
    // Predicated region
    $region18: #{embed_block.1} parent=1 // pred_check
      _
    $region19: #{embed_block.1} parent=1 // pred_check_branch
      %91 = sbr.rel (0) target = $region21
    $region20: #{embed_block.1} parent=1 // pred_region
      _
    $region21: #{embed_block.1} parent=1 // pred_fallthru
      _
    // Predicated region
    $region22: #{embed_block.1} parent=1 // pred_check
      _
    $region23: #{embed_block.1} parent=1 // pred_check_branch
      %93 = sbr.rel (0) target = $region25
    $region24: #{embed_block.1} parent=1 // pred_region
      _
    $region25: #{embed_block.1} parent=1 // pred_fallthru
      _
    // Predicated region
    $region26: #{embed_block.1} parent=1 // pred_check
      _
    $region27: #{embed_block.1} parent=1 // pred_check_branch
      %95 = sbr.rel (0) target = $region29
    $region28: #{embed_block.1} parent=1 // pred_region
      _
    $region29: #{embed_block.1} parent=1 // pred_fallthru
      _
    // Predicated region
    $region30: #{embed_block.1} parent=1 // pred_check
      _
    $region31: #{embed_block.1} parent=1 // pred_check_branch
      %97 = sbr.rel (0) target = $region33
    $region32: #{embed_block.1} parent=1 // pred_region
      _
    $region33: #{embed_block.1} parent=1 // pred_fallthru
      _
    // Predicated region
    $region34: #{embed_block.1} parent=1 // pred_check
      _
    $region35: #{embed_block.1} parent=1 // pred_check_branch
      %99 = sbr.rel (0) target = $region37
    $region36: #{embed_block.1} parent=1 // pred_region
      %s101 = ssub.s32 1024, 1024
      %102 = vsyncadd [#allocation3], %s101
      %s103 = sshll.u32 [#allocation2], 4
      %s104 = int_to_ptr.vmem [resolvable:$true] %s103
      %109 = dma.hbm_to_vmem [thread:$0]  %s17, 1024, %s104, [#allocation3], 64, 64, 4
    $region37: #{embed_block.1} parent=1 // pred_fallthru
      _
    // Predicated region
    $region38: #{embed_block.1} parent=1 // pred_check
      _
    $region39: #{embed_block.1} parent=1 // pred_check_branch
      %111 = sbr.rel (0) target = $region41
    $region40: #{embed_block.1} parent=1 // pred_region
      _
    $region41: #{embed_block.1} parent=1 // pred_fallthru
      _
    // Predicated region
    $region42: #{embed_block.1} parent=1 // pred_check
      _
    $region43: #{embed_block.1} parent=1 // pred_check_branch
      %113 = sbr.rel (0) target = $region45
    $region44: #{embed_block.1} parent=1 // pred_region
      _
    $region45: #{embed_block.1} parent=1 // pred_fallthru
      _
    // Predicated region
    $region46: #{embed_block.1} parent=1 // pred_check
      _
    $region47: #{embed_block.1} parent=1 // pred_check_branch
      %115 = sbr.rel (0) target = $region49
    $region48: #{embed_block.1} parent=1 // pred_region
      _
    $region49: #{embed_block.1} parent=1 // pred_fallthru
      _
    // Predicated region
    $region50: #{embed_block.1} parent=1 // pred_check
      _
    $region51: #{embed_block.1} parent=1 // pred_check_branch
      %117 = sbr.rel (0) target = $region53
    $region52: #{embed_block.1} parent=1 // pred_region
      _
    $region53: #{embed_block.1} parent=1 // pred_fallthru
      _
    // Predicated region
    $region54: #{embed_block.1} parent=1 // pred_check
      _
    $region55: #{embed_block.1} parent=1 // pred_check_branch
      %119 = sbr.rel (0) target = $region57
    $region56: #{embed_block.1} parent=1 // pred_region
      _
    $region57: #{embed_block.1} parent=1 // pred_fallthru
      _
    // Predicated region
    $region58: #{embed_block.1} parent=1 // pred_check
      _
    $region59: #{embed_block.1} parent=1 // pred_check_branch
      %121 = sbr.rel (0) target = $region61
    $region60: #{embed_block.1} parent=1 // pred_region
      _
    $region61: #{embed_block.1} parent=1 // pred_fallthru
      _
    // Predicated region
    $region62: #{embed_block.1} parent=1 // pred_check
      _
    $region63: #{embed_block.1} parent=1 // pred_check_branch
      %123 = sbr.rel (0) target = $region65
    $region64: #{embed_block.1} parent=1 // pred_region
      _
    $region65: #{embed_block.1} parent=1 // pred_fallthru
      _
    // Predicated region
    $region66: #{embed_block.1} parent=1 // pred_check
      _
    $region67: #{embed_block.1} parent=1 // pred_check_branch
      %125 = sbr.rel (0) target = $region69
    $region68: #{embed_block.1} parent=1 // pred_region
      %s127 = ssub.s32 2048, 2048
      %128 = vsyncadd [#allocation5], %s127
      %s129 = sshll.u32 [#allocation4], 4
      %s130 = int_to_ptr.vmem [resolvable:$true] %s129
      %135 = dma.hbm_to_vmem [thread:$0]  %s33, 2048, %s130, [#allocation5], 128, 128, 8
    $region69: #{embed_block.1} parent=1 // pred_fallthru
      _
    // Predicated region
    $region70: #{embed_block.1} parent=1 // pred_check
      _
    $region71: #{embed_block.1} parent=1 // pred_check_branch
      %137 = sbr.rel (0) target = $region73
    $region72: #{embed_block.1} parent=1 // pred_region
      _
    $region73: #{embed_block.1} parent=1 // pred_fallthru
      _
    // Predicated region
    $region74: #{embed_block.1} parent=1 // pred_check
      _
    $region75: #{embed_block.1} parent=1 // pred_check_branch
      %139 = sbr.rel (0) target = $region77
    $region76: #{embed_block.1} parent=1 // pred_region
      %s141 = ssub.s32 2048, 2048
      %142 = vsyncadd [#allocation5], %s141
      %s143 = sshll.u32 [#allocation6], 4
      %s144 = int_to_ptr.vmem [resolvable:$true] %s143
      %149 = dma.hbm_to_vmem [thread:$0]  %s37, 2048, %s144, [#allocation5], 128, 128, 8
    $region77: #{embed_block.1} parent=1 // pred_fallthru
      _
    // Predicated region
    $region78: #{embed_block.1} parent=1 // pred_check
      _
    $region79: #{embed_block.1} parent=1 // pred_check_branch
      %151 = sbr.rel (0) target = $region81
    $region80: #{embed_block.1} parent=1 // pred_region
      _
    $region81: #{embed_block.1} parent=1 // pred_fallthru
      _
    // Predicated region
    $region82: #{embed_block.1} parent=1 // pred_check
      _
    $region83: #{embed_block.1} parent=1 // pred_check_branch
      %153 = sbr.rel (0) target = $region85
    $region84: #{embed_block.1} parent=1 // pred_region
      %s155 = ssub.s32 2048, 2048
      %156 = vsyncadd [#allocation8], %s155
      %s157 = sshll.u32 [#allocation7], 4
      %s158 = int_to_ptr.vmem [resolvable:$true] %s157
      %163 = dma.hbm_to_vmem [thread:$0]  %s41, 2048, %s158, [#allocation8], 64, 64, 4
    $region85: #{embed_block.1} parent=1 // pred_fallthru
      _
    // Predicated region
    $region86: #{embed_block.1} parent=1 // pred_check
      _
    $region87: #{embed_block.1} parent=1 // pred_check_branch
      %165 = sbr.rel (0) target = $region89
    $region88: #{embed_block.1} parent=1 // pred_region
      _
    $region89: #{embed_block.1} parent=1 // pred_fallthru
      _
    // Predicated region
    $region90: #{embed_block.1} parent=1 // pred_check
      _
    $region91: #{embed_block.1} parent=1 // pred_check_branch
      %167 = sbr.rel (0) target = $region93
    $region92: #{embed_block.1} parent=1 // pred_region
      _
    $region93: #{embed_block.1} parent=1 // pred_fallthru
      _
    // Predicated region
    $region94: #{embed_block.1} parent=1 // pred_check
      _
    $region95: #{embed_block.1} parent=1 // pred_check_branch
      %169 = sbr.rel (0) target = $region97
    $region96: #{embed_block.1} parent=1 // pred_region
      _
    $region97: #{embed_block.1} parent=1 // pred_fallthru
      _
    // Predicated region
    $region98: #{embed_block.1} parent=1 // pred_check
      _
    $region99: #{embed_block.1} parent=1 // pred_check_branch
      %171 = sbr.rel (0) target = $region101
    $region100: #{embed_block.1} parent=1 // pred_region
      _
    $region101: #{embed_block.1} parent=1 // pred_fallthru
      _
    // Predicated region
    $region102: #{embed_block.1} parent=1 // pred_check
      _
    $region103: #{embed_block.1} parent=1 // pred_check_branch
      %173 = sbr.rel (0) target = $region105
    $region104: #{embed_block.1} parent=1 // pred_region
      _
    $region105: #{embed_block.1} parent=1 // pred_fallthru
      _
    // Predicated region
    $region106: #{embed_block.1} parent=1 // pred_check
      _
    $region107: #{embed_block.1} parent=1 // pred_check_branch
      %175 = sbr.rel (0) target = $region109
    $region108: #{embed_block.1} parent=1 // pred_region
      %s177 = ssub.s32 1024, 1024
      %178 = vsyncadd [#allocation8], %s177
      %s179 = sshll.u32 [#allocation9], 4
      %s180 = int_to_ptr.vmem [resolvable:$true] %s179
      %185 = dma.hbm_to_vmem [thread:$0]  %s53, 1024, %s180, [#allocation8], 64, 64, 4
    $region109: #{embed_block.1} parent=1 // pred_fallthru
      _
    // Predicated region
    $region110: #{embed_block.1} parent=1 // pred_check
      _
    $region111: #{embed_block.1} parent=1 // pred_check_branch
      %187 = sbr.rel (0) target = $region113
    $region112: #{embed_block.1} parent=1 // pred_region
      _
    $region113: #{embed_block.1} parent=1 // pred_fallthru
      _
    // Predicated region
    $region114: #{embed_block.1} parent=1 // pred_check
      _
    $region115: #{embed_block.1} parent=1 // pred_check_branch
      %189 = sbr.rel (0) target = $region117
    $region116: #{embed_block.1} parent=1 // pred_region
      %s191 = ssub.s32 1024, 1024
      %192 = vsyncadd [#allocation11], %s191
      %s193 = sshll.u32 [#allocation10], 4
      %s194 = int_to_ptr.vmem [resolvable:$true] %s193
      %199 = dma.hbm_to_vmem [thread:$0]  %s57, 1024, %s194, [#allocation11], 64, 64, 4
    $region117: #{embed_block.1} parent=1 // pred_fallthru
      _
    // Predicated region
    $region118: #{embed_block.1} parent=1 // pred_check
      _
    $region119: #{embed_block.1} parent=1 // pred_check_branch
      %201 = sbr.rel (0) target = $region121
    $region120: #{embed_block.1} parent=1 // pred_region
      _
    $region121: #{embed_block.1} parent=1 // pred_fallthru
      _
    // Predicated region
    $region122: #{embed_block.1} parent=1 // pred_check
      _
    $region123: #{embed_block.1} parent=1 // pred_check_branch
      %203 = sbr.rel (0) target = $region125
    $region124: #{embed_block.1} parent=1 // pred_region
      %s205 = ssub.s32 1024, 1024
      %206 = vsyncadd [#allocation11], %s205
      %s207 = sshll.u32 [#allocation12], 4
      %s208 = int_to_ptr.vmem [resolvable:$true] %s207
      %213 = dma.hbm_to_vmem [thread:$0]  %s61, 1024, %s208, [#allocation11], 64, 64, 4
    $region125: #{embed_block.1} parent=1 // pred_fallthru
      _
    // Predicated region
    $region126: #{embed_block.1} parent=1 // pred_check
      _
    $region127: #{embed_block.1} parent=1 // pred_check_branch
      %215 = sbr.rel (0) target = $region129
    $region128: #{embed_block.1} parent=1 // pred_region
      _
    $region129: #{embed_block.1} parent=1 // pred_fallthru
      _
    // Predicated region
    $region130: #{embed_block.1} parent=1 // pred_check
      _
    $region131: #{embed_block.1} parent=1 // pred_check_branch
      %217 = sbr.rel (0) target = $region133
    $region132: #{embed_block.1} parent=1 // pred_region
      %s219 = ssub.s32 1024, 1024
      %220 = vsyncadd [#allocation14], %s219
      %s221 = sshll.u32 [#allocation13], 4
      %s222 = int_to_ptr.vmem [resolvable:$true] %s221
      %227 = dma.hbm_to_vmem [thread:$0]  %s65, 1024, %s222, [#allocation14], 64, 64, 4
    $region133: #{embed_block.1} parent=1 // pred_fallthru
      _
    // Predicated region
    $region134: #{embed_block.1} parent=1 // pred_check
      _
    $region135: #{embed_block.1} parent=1 // pred_check_branch
      %229 = sbr.rel (0) target = $region137
    $region136: #{embed_block.1} parent=1 // pred_region
      _
    $region137: #{embed_block.1} parent=1 // pred_fallthru
      _
    // Predicated region
    $region138: #{embed_block.1} parent=1 // pred_check
      _
    $region139: #{embed_block.1} parent=1 // pred_check_branch
      %231 = sbr.rel (0) target = $region141
    $region140: #{embed_block.1} parent=1 // pred_region
      %232 = dma.done [#allocation3], 1024
    $region141: #{embed_block.1} parent=1 // pred_fallthru
      _
    // Predicated region
    $region142: #{embed_block.1} parent=1 // pred_check
      _
    $region143: #{embed_block.1} parent=1 // pred_check_branch
      %234 = sbr.rel (0) target = $region145
    $region144: #{embed_block.1} parent=1 // pred_region
      %235 = dma.done [#allocation5], 2048
    $region145: #{embed_block.1} parent=1 // pred_fallthru
      _
    // Predicated region
    $region146: #{embed_block.1} parent=1 // pred_check
      _
    $region147: #{embed_block.1} parent=1 // pred_check_branch
      %237 = sbr.rel (0) target = $region149
    $region148: #{embed_block.1} parent=1 // pred_region
      %238 = dma.done [#allocation5], 2048
    $region149: #{embed_block.1} parent=1 // pred_fallthru
      _
    // Predicated region
    $region150: #{embed_block.1} parent=1 // pred_check
      _
    $region151: #{embed_block.1} parent=1 // pred_check_branch
      %240 = sbr.rel (0) target = $region153
    $region152: #{embed_block.1} parent=1 // pred_region
      %241 = dma.done [#allocation8], 2048
    $region153: #{embed_block.1} parent=1 // pred_fallthru
      _
    // Predicated region
    $region154: #{embed_block.1} parent=1 // pred_check
      _
    $region155: #{embed_block.1} parent=1 // pred_check_branch
      %243 = sbr.rel (0) target = $region157
    $region156: #{embed_block.1} parent=1 // pred_region
      %244 = dma.done [#allocation8], 1024
    $region157: #{embed_block.1} parent=1 // pred_fallthru
      _
    // Predicated region
    $region158: #{embed_block.1} parent=1 // pred_check
      _
    $region159: #{embed_block.1} parent=1 // pred_check_branch
      %246 = sbr.rel (0) target = $region161
    $region160: #{embed_block.1} parent=1 // pred_region
      %247 = dma.done [#allocation11], 1024
    $region161: #{embed_block.1} parent=1 // pred_fallthru
      _
    // Predicated region
    $region162: #{embed_block.1} parent=1 // pred_check
      _
    $region163: #{embed_block.1} parent=1 // pred_check_branch
      %249 = sbr.rel (0) target = $region165
    $region164: #{embed_block.1} parent=1 // pred_region
      %250 = dma.done [#allocation11], 1024
    $region165: #{embed_block.1} parent=1 // pred_fallthru
      _
    // Predicated region
    $region166: #{embed_block.1} parent=1 // pred_check
      _
    $region167: #{embed_block.1} parent=1 // pred_check_branch
      %252 = sbr.rel (0) target = $region169
    $region168: #{embed_block.1} parent=1 // pred_region
      %253 = dma.done [#allocation14], 1024
    $region169: #{embed_block.1} parent=1 // pred_fallthru
      _
    %v255 = vld [vmem:[%s1] sm:$0xff]
    %v256 = vld [vmem:[%s1 + $0x8] sm:$0xff]
    %v257 = vld [vmem:[%s5] sm:$0x1]
    %v258 = vld [vmem:[%s7] sm:$0x1]
    %259 = vadd.xlane.f32.xlu0 %v255
    %v260 = vpop.xlane.xlu0 %259
    %261 = vadd.xlane.f32.xlu0 %v256
    %v262 = vpop.xlane.xlu0 %261
    %v263 = vmul.f32 %v260, 0.03125
    %v264 = vmul.f32 %v262, 0.03125
    %v265 = vmul.f32 %v255, %v255
    %v266 = vmul.f32 %v256, %v256
    %267 = vadd.xlane.f32.xlu0 %v265
    %v268 = vpop.xlane.xlu0 %267
    %269 = vadd.xlane.f32.xlu0 %v266
    %v270 = vpop.xlane.xlu0 %269
    %v271 = vmul.f32 %v268, 0.03125
    %v272 = vmul.f32 %v270, 0.03125
    %v273 = vmul.f32 %v263, %v263
    %v274 = vmul.f32 %v264, %v264
    %v275 = vsub.f32 %v271, %v273
    %v276 = vsub.f32 %v272, %v274
    %v277 = vmax.f32 %v275, 0.0
    %v278 = vmax.f32 %v276, 0.0
    %v279 = vsub.f32 %v255, %v263
    %v280 = vsub.f32 %v256, %v264
    %v281 = vadd.f32 %v277, 1e-05
    %v282 = vadd.f32 %v278, 1e-05
    %v283 = vrsqrt.pop %v281
    %v284 = vrsqrt.pop %v282
    %v285 = vmul.f32 %v279, %v283
    %v286 = vmul.f32 %v280, %v284
    %v288 = vlaneseq
    %v289 = vshrl.u32 %v288, 7
    %v290 = vsub.s32 0, %v289
    %v291 = vrot.slane %v257, %v290
    %v293 = vmul.f32 %v285, %v291
    %v294 = vmul.f32 %v286, %v291
    %v296 = vlaneseq
    %v297 = vshrl.u32 %v296, 7
    %v298 = vsub.s32 0, %v297
    %v299 = vrot.slane %v258, %v298
    %v301 = vadd.f32 %v293, %v299
    %v302 = vadd.f32 %v294, %v299
    %v303 = vld [vmem:[%s3] sm:$0xff]
    %v304 = vld [vmem:[%s3 + $0x8] sm:$0xff]
    %v305 = vld [vmem:[%s9] sm:$0x1]
    %v306 = vld [vmem:[%s11] sm:$0x1]
    %307 = vadd.xlane.f32.xlu0 %v303
    %v308 = vpop.xlane.xlu0 %307
    %309 = vadd.xlane.f32.xlu0 %v304
    %v310 = vpop.xlane.xlu0 %309
    %v311 = vmul.f32 %v308, 0.03125
    %v312 = vmul.f32 %v310, 0.03125
    %v313 = vmul.f32 %v303, %v303
    %v314 = vmul.f32 %v304, %v304
    %315 = vadd.xlane.f32.xlu0 %v313
    %v316 = vpop.xlane.xlu0 %315
    %317 = vadd.xlane.f32.xlu0 %v314
    %v318 = vpop.xlane.xlu0 %317
    %v319 = vmul.f32 %v316, 0.03125
    %v320 = vmul.f32 %v318, 0.03125
    %v321 = vmul.f32 %v311, %v311
    %v322 = vmul.f32 %v312, %v312
    %v323 = vsub.f32 %v319, %v321
    %v324 = vsub.f32 %v320, %v322
    %v325 = vmax.f32 %v323, 0.0
    %v326 = vmax.f32 %v324, 0.0
    %v327 = vsub.f32 %v303, %v311
    %v328 = vsub.f32 %v304, %v312
    %v329 = vadd.f32 %v325, 1e-05
    %v330 = vadd.f32 %v326, 1e-05
    %v331 = vrsqrt.pop %v329
    %v332 = vrsqrt.pop %v330
    %v333 = vmul.f32 %v327, %v331
    %v334 = vmul.f32 %v328, %v332
    %v336 = vlaneseq
    %v337 = vshrl.u32 %v336, 7
    %v338 = vsub.s32 0, %v337
    %v339 = vrot.slane %v305, %v338
    %v341 = vmul.f32 %v333, %v339
    %v342 = vmul.f32 %v334, %v339
    %v344 = vlaneseq
    %v345 = vshrl.u32 %v344, 7
    %v346 = vsub.s32 0, %v345
    %v347 = vrot.slane %v306, %v346
    %v349 = vadd.f32 %v341, %v347
    %v350 = vadd.f32 %v342, %v347
    %v351 = vpack.c.bf16 %v302, %v301
    %v352 = vld [vmem:[%s13] sm:$0xf]
    %v353 = vld [vmem:[%s13 + $0x4] sm:$0xf]
    %v354 = vld [vmem:[%s13 + $0x8] sm:$0xf]
    %v355 = vld [vmem:[%s13 + $0xc] sm:$0xf]
    %v356 = vld [vmem:[%s13 + $0x10] sm:$0xf]
    %v357 = vld [vmem:[%s13 + $0x14] sm:$0xf]
    %v358 = vld [vmem:[%s13 + $0x18] sm:$0xf]
    %v359 = vld [vmem:[%s13 + $0x1c] sm:$0xf]
    %v360 = vld [vmem:[%s13 + $0x20] sm:$0xf]
    %v361 = vld [vmem:[%s13 + $0x24] sm:$0xf]
    %v362 = vld [vmem:[%s13 + $0x28] sm:$0xf]
    %v363 = vld [vmem:[%s13 + $0x2c] sm:$0xf]
    %v364 = vld [vmem:[%s13 + $0x30] sm:$0xf]
    %v365 = vld [vmem:[%s13 + $0x34] sm:$0xf]
    %v366 = vld [vmem:[%s13 + $0x38] sm:$0xf]
    %v367 = vld [vmem:[%s13 + $0x3c] sm:$0xf]
    %v368 = vld [vmem:[%s15] sm:$0x1]
    %v370 = vlaneseq
    %v371 = vshrl.u32 %v370, 7
    %v372 = vsub.s32 0, %v371
    %v373 = vrot.slane %v368, %v372
    %v391 = vunpack.c.l.b16 %v352
    %v392 = vunpack.c.l.b16 %v353
    %v393 = vunpack.c.l.b16 %v354
    %v394 = vunpack.c.l.b16 %v355
    %v395 = vunpack.c.l.b16 %v356
    %v396 = vunpack.c.l.b16 %v357
    %v397 = vunpack.c.l.b16 %v358
    %v398 = vunpack.c.l.b16 %v359
    %v399 = vunpack.c.l.b16 %v360
    %v400 = vunpack.c.l.b16 %v361
    %v401 = vunpack.c.l.b16 %v362
    %v402 = vunpack.c.l.b16 %v363
    %v403 = vunpack.c.l.b16 %v364
    %v404 = vunpack.c.l.b16 %v365
    %v405 = vunpack.c.l.b16 %v366
    %v406 = vunpack.c.l.b16 %v367
    %v407 = vpack.c.b16 %v392, %v391
    %v408 = vpack.c.b16 %v394, %v393
    %v409 = vpack.c.b16 %v396, %v395
    %v410 = vpack.c.b16 %v398, %v397
    %v411 = vpack.c.b16 %v400, %v399
    %v412 = vpack.c.b16 %v402, %v401
    %v413 = vpack.c.b16 %v404, %v403
    %v414 = vpack.c.b16 %v406, %v405
    %423 = vmatprep.subr.bf16.mxu0 0
    %424 = vmatpush1.bf16.msra.mxu0 %v407
    %425 = vmatprep.subr.bf16.mxu0 0
    %426 = vmatpush1.bf16.msra.mxu0 %v408
    %427 = vmatprep.subr.bf16.mxu0 0
    %428 = vmatpush1.bf16.msra.mxu0 %v409
    %429 = vmatprep.subr.bf16.mxu0 0
    %430 = vmatpush1.bf16.msra.mxu0 %v410
    %431 = vmatprep.subr.bf16.mxu0 0
    %432 = vmatpush1.bf16.msra.mxu0 %v411
    %433 = vmatprep.subr.bf16.mxu0 0
    %434 = vmatpush1.bf16.msra.mxu0 %v412
    %435 = vmatprep.subr.bf16.mxu0 0
    %436 = vmatpush1.bf16.msra.mxu0 %v413
    %437 = vmatprep.subr.bf16.mxu0 0
    %438 = vmatpush1.bf16.msra.mxu0 %v414
    %439 = vmatprep.subr.bf16.mxu0 0
    %440 = vmatpush1.bf16.msra.mxu0 0
    %441 = vmatprep.subr.bf16.mxu0 0
    %442 = vmatpush1.bf16.msra.mxu0 0
    %443 = vmatprep.subr.bf16.mxu0 0
    %444 = vmatpush1.bf16.msra.mxu0 0
    %445 = vmatprep.subr.bf16.mxu0 0
    %446 = vmatpush1.bf16.msra.mxu0 0
    %447 = vmatprep.subr.bf16.mxu0 0
    %448 = vmatpush1.bf16.msra.mxu0 0
    %449 = vmatprep.subr.bf16.mxu0 0
    %450 = vmatpush1.bf16.msra.mxu0 0
    %451 = vmatprep.subr.bf16.mxu0 0
    %452 = vmatpush1.bf16.msra.mxu0 0
    %453 = vmatprep.subr.bf16.mxu0 0
    %454 = vmatpush1.bf16.msra.mxu0 0
    %455 = vmatprep.mubr.bf16.mxu0 0
    %456 = vmatmul.mubr.bf16.gmra.mrb[0].mxu0 %v351
    %v457 = vpop.f32.mrb[0].mxu0
    %v458 = vadd.f32 %v373, %v457
    %v459 = vpop.f32.mrb[0].mxu0
    %v460 = vpop.f32.mrb[0].mxu0
    %v461 = vadd.f32 %v373, %v460
    %v462 = vpop.f32.mrb[0].mxu0
    %463 = vdwg.mxu0
    %v464 = vpack.c.bf16 %v350, %v349
    %v465 = vld [vmem:[#allocation2] sm:$0xf]
    %v466 = vld [vmem:[#allocation2 + $0x4] sm:$0xf]
    %v467 = vld [vmem:[#allocation2 + $0x8] sm:$0xf]
    %v468 = vld [vmem:[#allocation2 + $0xc] sm:$0xf]
    %v469 = vld [vmem:[#allocation2 + $0x10] sm:$0xf]
    %v470 = vld [vmem:[#allocation2 + $0x14] sm:$0xf]
    %v471 = vld [vmem:[#allocation2 + $0x18] sm:$0xf]
    %v472 = vld [vmem:[#allocation2 + $0x1c] sm:$0xf]
    %v473 = vld [vmem:[#allocation2 + $0x20] sm:$0xf]
    %v474 = vld [vmem:[#allocation2 + $0x24] sm:$0xf]
    %v475 = vld [vmem:[#allocation2 + $0x28] sm:$0xf]
    %v476 = vld [vmem:[#allocation2 + $0x2c] sm:$0xf]
    %v477 = vld [vmem:[#allocation2 + $0x30] sm:$0xf]
    %v478 = vld [vmem:[#allocation2 + $0x34] sm:$0xf]
    %v479 = vld [vmem:[#allocation2 + $0x38] sm:$0xf]
    %v480 = vld [vmem:[#allocation2 + $0x3c] sm:$0xf]
    %v481 = vld [vmem:[%s19] sm:$0x1]
    %v483 = vlaneseq
    %v484 = vshrl.u32 %v483, 7
    %v485 = vsub.s32 0, %v484
    %v486 = vrot.slane %v481, %v485
    %v504 = vunpack.c.l.b16 %v465
    %v505 = vunpack.c.l.b16 %v466
    %v506 = vunpack.c.l.b16 %v467
    %v507 = vunpack.c.l.b16 %v468
    %v508 = vunpack.c.l.b16 %v469
    %v509 = vunpack.c.l.b16 %v470
    %v510 = vunpack.c.l.b16 %v471
    %v511 = vunpack.c.l.b16 %v472
    %v512 = vunpack.c.l.b16 %v473
    %v513 = vunpack.c.l.b16 %v474
    %v514 = vunpack.c.l.b16 %v475
    %v515 = vunpack.c.l.b16 %v476
    %v516 = vunpack.c.l.b16 %v477
    %v517 = vunpack.c.l.b16 %v478
    %v518 = vunpack.c.l.b16 %v479
    %v519 = vunpack.c.l.b16 %v480
    %v520 = vpack.c.b16 %v505, %v504
    %v521 = vpack.c.b16 %v507, %v506
    %v522 = vpack.c.b16 %v509, %v508
    %v523 = vpack.c.b16 %v511, %v510
    %v524 = vpack.c.b16 %v513, %v512
    %v525 = vpack.c.b16 %v515, %v514
    %v526 = vpack.c.b16 %v517, %v516
    %v527 = vpack.c.b16 %v519, %v518
    %536 = vmatprep.subr.bf16.mxu0 0
    %537 = vmatpush1.bf16.msra.mxu0 %v520
    %538 = vmatprep.subr.bf16.mxu0 0
    %539 = vmatpush1.bf16.msra.mxu0 %v521
    %540 = vmatprep.subr.bf16.mxu0 0
    %541 = vmatpush1.bf16.msra.mxu0 %v522
    %542 = vmatprep.subr.bf16.mxu0 0
    %543 = vmatpush1.bf16.msra.mxu0 %v523
    %544 = vmatprep.subr.bf16.mxu0 0
    %545 = vmatpush1.bf16.msra.mxu0 %v524
    %546 = vmatprep.subr.bf16.mxu0 0
    %547 = vmatpush1.bf16.msra.mxu0 %v525
    %548 = vmatprep.subr.bf16.mxu0 0
    %549 = vmatpush1.bf16.msra.mxu0 %v526
    %550 = vmatprep.subr.bf16.mxu0 0
    %551 = vmatpush1.bf16.msra.mxu0 %v527
    %552 = vmatprep.subr.bf16.mxu0 0
    %553 = vmatpush1.bf16.msra.mxu0 0
    %554 = vmatprep.subr.bf16.mxu0 0
    %555 = vmatpush1.bf16.msra.mxu0 0
    %556 = vmatprep.subr.bf16.mxu0 0
    %557 = vmatpush1.bf16.msra.mxu0 0
    %558 = vmatprep.subr.bf16.mxu0 0
    %559 = vmatpush1.bf16.msra.mxu0 0
    %560 = vmatprep.subr.bf16.mxu0 0
    %561 = vmatpush1.bf16.msra.mxu0 0
    %562 = vmatprep.subr.bf16.mxu0 0
    %563 = vmatpush1.bf16.msra.mxu0 0
    %564 = vmatprep.subr.bf16.mxu0 0
    %565 = vmatpush1.bf16.msra.mxu0 0
    %566 = vmatprep.subr.bf16.mxu0 0
    %567 = vmatpush1.bf16.msra.mxu0 0
    %568 = vmatprep.mubr.bf16.mxu0 0
    %569 = vmatmul.mubr.bf16.gmra.mrb[0].mxu0 %v464
    %v570 = vpop.f32.mrb[0].mxu0
    %v571 = vadd.f32 %v486, %v570
    %v572 = vpop.f32.mrb[0].mxu0
    %v573 = vpop.f32.mrb[0].mxu0
    %v574 = vadd.f32 %v486, %v573
    %v575 = vpop.f32.mrb[0].mxu0
    %576 = vdwg.mxu0
    %v577 = vld [vmem:[%s21] sm:$0x1]
    %v578 = vmul.f32 %v458, %v458
    %v579 = vmul.f32 %v461, %v461
    %580 = vadd.xlane.f32.xlu0 %v578
    %v581 = vpop.xlane.xlu0 %580
    %582 = vadd.xlane.f32.xlu0 %v579
    %v583 = vpop.xlane.xlu0 %582
    %v584 = vmul.f32 %v581, 0.014705882
    %v585 = vmul.f32 %v583, 0.014705882
    %v586 = vadd.f32 %v584, 1e-06
    %v587 = vadd.f32 %v585, 1e-06
    %v588 = vrsqrt.pop %v586
    %v589 = vrsqrt.pop %v587
    %v590 = vmul.f32 %v458, %v588
    %v591 = vmul.f32 %v461, %v589
    %v593 = vlaneseq
    %v594 = vshrl.u32 %v593, 7
    %v595 = vsub.s32 0, %v594
    %v596 = vrot.slane %v577, %v595
    %v598 = vmul.f32 %v596, %v590
    %v599 = vmul.f32 %v596, %v591
    %v600 = vld [vmem:[%s25] sm:$0x1]
    %v601 = vmul.f32 %v571, %v571
    %v602 = vmul.f32 %v574, %v574
    %603 = vadd.xlane.f32.xlu0 %v601
    %v604 = vpop.xlane.xlu0 %603
    %605 = vadd.xlane.f32.xlu0 %v602
    %v606 = vpop.xlane.xlu0 %605
    %v607 = vmul.f32 %v604, 0.014705882
    %v608 = vmul.f32 %v606, 0.014705882
    %v609 = vadd.f32 %v607, 1e-06
    %v610 = vadd.f32 %v608, 1e-06
    %v611 = vrsqrt.pop %v609
    %v612 = vrsqrt.pop %v610
    %v613 = vmul.f32 %v571, %v611
    %v614 = vmul.f32 %v574, %v612
    %v616 = vlaneseq
    %v617 = vshrl.u32 %v616, 7
    %v618 = vsub.s32 0, %v617
    %v619 = vrot.slane %v600, %v618
    %v621 = vmul.f32 %v619, %v613
    %v622 = vmul.f32 %v619, %v614
    %v623 = vmul.f32 %v598, %v621
    %v624 = vmul.f32 %v599, %v622
    %v625 = vld [vmem:[%s23] sm:$0x1]
    %v627 = vlaneseq
    %v628 = vshrl.u32 %v627, 7
    %v629 = vsub.s32 0, %v628
    %v630 = vrot.slane %v625, %v629
    %v632 = vmul.f32 %v630, %v590
    %v633 = vmul.f32 %v630, %v591
    %v634 = vld [vmem:[%s27] sm:$0x1]
    %v636 = vlaneseq
    %v637 = vshrl.u32 %v636, 7
    %v638 = vsub.s32 0, %v637
    %v639 = vrot.slane %v634, %v638
    %v641 = vmul.f32 %v639, %v613
    %v642 = vmul.f32 %v639, %v614
    %v643 = vmul.f32 %v632, %v641
    %v644 = vmul.f32 %v633, %v642
    %v645 = vmul.f32 %v458, %v571
    %v646 = vmul.f32 %v461, %v574
    %v647 = vpack.c.bf16 %v624, %v623
    %v648 = vld [vmem:[%s29] sm:$0xff]
    %v649 = vld [vmem:[%s29 + $0x8] sm:$0xff]
    %v650 = vld [vmem:[%s29 + $0x10] sm:$0xff]
    %v651 = vld [vmem:[%s29 + $0x18] sm:$0xff]
    %v652 = vld [vmem:[%s29 + $0x20] sm:$0xff]
    %v653 = vld [vmem:[%s29 + $0x28] sm:$0xff]
    %v654 = vld [vmem:[%s29 + $0x30] sm:$0xff]
    %v655 = vld [vmem:[%s29 + $0x38] sm:$0xff]
    %v656 = vld [vmem:[%s29 + $0x40] sm:$0xff]
    %v657 = vld [vmem:[%s29 + $0x48] sm:$0xff]
    %v658 = vld [vmem:[%s29 + $0x50] sm:$0xff]
    %v659 = vld [vmem:[%s29 + $0x58] sm:$0xff]
    %v660 = vld [vmem:[%s29 + $0x60] sm:$0xff]
    %v661 = vld [vmem:[%s29 + $0x68] sm:$0xff]
    %v662 = vld [vmem:[%s29 + $0x70] sm:$0xff]
    %v663 = vld [vmem:[%s29 + $0x78] sm:$0xff]
    %v664 = vld [vmem:[%s31] sm:$0x3]
    %v666 = vlaneseq
    %v667 = vshrl.u32 %v666, 7
    %v668 = vsub.s32 0, %v667
    %v669 = vrot.slane %v664, %v668
    %v670 = vlaneseq
    %v671 = vshrl.u32 %v670, 7
    %v672 = vsub.s32 1, %v671
    %v673 = vrot.slane %v664, %v672
    %v692 = vunpack.c.l.b16 %v648
    %v693 = vunpack.c.h.b16 %v648
    %v694 = vunpack.c.l.b16 %v649
    %v695 = vunpack.c.h.b16 %v649
    %v696 = vunpack.c.l.b16 %v650
    %v697 = vunpack.c.h.b16 %v650
    %v698 = vunpack.c.l.b16 %v651
    %v699 = vunpack.c.h.b16 %v651
    %v700 = vunpack.c.l.b16 %v652
    %v701 = vunpack.c.h.b16 %v652
    %v702 = vunpack.c.l.b16 %v653
    %v703 = vunpack.c.h.b16 %v653
    %v704 = vunpack.c.l.b16 %v654
    %v705 = vunpack.c.h.b16 %v654
    %v706 = vunpack.c.l.b16 %v655
    %v707 = vunpack.c.h.b16 %v655
    %v708 = vunpack.c.l.b16 %v656
    %v709 = vunpack.c.h.b16 %v656
    %v710 = vunpack.c.l.b16 %v657
    %v711 = vunpack.c.h.b16 %v657
    %v712 = vunpack.c.l.b16 %v658
    %v713 = vunpack.c.h.b16 %v658
    %v714 = vunpack.c.l.b16 %v659
    %v715 = vunpack.c.h.b16 %v659
    %v716 = vunpack.c.l.b16 %v660
    %v717 = vunpack.c.h.b16 %v660
    %v718 = vunpack.c.l.b16 %v661
    %v719 = vunpack.c.h.b16 %v661
    %v720 = vunpack.c.l.b16 %v662
    %v721 = vunpack.c.h.b16 %v662
    %v722 = vunpack.c.l.b16 %v663
    %v723 = vunpack.c.h.b16 %v663
    %v724 = vpack.c.b16 %v694, %v692
    %v725 = vpack.c.b16 %v695, %v693
    %v726 = vpack.c.b16 %v698, %v696
    %v727 = vpack.c.b16 %v699, %v697
    %v728 = vpack.c.b16 %v702, %v700
    %v729 = vpack.c.b16 %v703, %v701
    %v730 = vpack.c.b16 %v706, %v704
    %v731 = vpack.c.b16 %v707, %v705
    %v732 = vpack.c.b16 %v710, %v708
    %v733 = vpack.c.b16 %v711, %v709
    %v734 = vpack.c.b16 %v714, %v712
    %v735 = vpack.c.b16 %v715, %v713
    %v736 = vpack.c.b16 %v718, %v716
    %v737 = vpack.c.b16 %v719, %v717
    %v738 = vpack.c.b16 %v722, %v720
    %v739 = vpack.c.b16 %v723, %v721
    %756 = vmatprep.subr.bf16.mxu0 %v725
    %757 = vmatpush1.bf16.msra.mxu0 %v724
    %758 = vmatprep.subr.bf16.mxu0 %v727
    %759 = vmatpush1.bf16.msra.mxu0 %v726
    %760 = vmatprep.subr.bf16.mxu0 %v729
    %761 = vmatpush1.bf16.msra.mxu0 %v728
    %762 = vmatprep.subr.bf16.mxu0 %v731
    %763 = vmatpush1.bf16.msra.mxu0 %v730
    %764 = vmatprep.subr.bf16.mxu0 %v733
    %765 = vmatpush1.bf16.msra.mxu0 %v732
    %766 = vmatprep.subr.bf16.mxu0 %v735
    %767 = vmatpush1.bf16.msra.mxu0 %v734
    %768 = vmatprep.subr.bf16.mxu0 %v737
    %769 = vmatpush1.bf16.msra.mxu0 %v736
    %770 = vmatprep.subr.bf16.mxu0 %v739
    %771 = vmatpush1.bf16.msra.mxu0 %v738
    %772 = vmatprep.subr.bf16.mxu0 0
    %773 = vmatpush1.bf16.msra.mxu0 0
    %774 = vmatprep.subr.bf16.mxu0 0
    %775 = vmatpush1.bf16.msra.mxu0 0
    %776 = vmatprep.subr.bf16.mxu0 0
    %777 = vmatpush1.bf16.msra.mxu0 0
    %778 = vmatprep.subr.bf16.mxu0 0
    %779 = vmatpush1.bf16.msra.mxu0 0
    %780 = vmatprep.subr.bf16.mxu0 0
    %781 = vmatpush1.bf16.msra.mxu0 0
    %782 = vmatprep.subr.bf16.mxu0 0
    %783 = vmatpush1.bf16.msra.mxu0 0
    %784 = vmatprep.subr.bf16.mxu0 0
    %785 = vmatpush1.bf16.msra.mxu0 0
    %786 = vmatprep.subr.bf16.mxu0 0
    %787 = vmatpush1.bf16.msra.mxu0 0
    %788 = vmatprep.mubr.bf16.mxu0 0
    %789 = vmatmul.mubr.bf16.gmra.mrb[0].mxu0 %v647
    %v790 = vpop.f32.mrb[0].mxu0
    %v791 = vadd.f32 %v669, %v790
    %v792 = vpop.f32.mrb[0].mxu0
    %v793 = vadd.f32 %v673, %v792
    %v794 = vpop.f32.mrb[0].mxu0
    %v795 = vadd.f32 %v669, %v794
    %v796 = vpop.f32.mrb[0].mxu0
    %v797 = vadd.f32 %v673, %v796
    %798 = vdwg.mxu0
    %v799 = vmul.f32 %v791, 0.17149858
    %v800 = vmul.f32 %v793, 0.17149858
    %v801 = vmul.f32 %v795, 0.17149858
    %v802 = vmul.f32 %v797, 0.17149858
    %v803 = vpack.c.bf16 %v644, %v643
    %v804 = vld [vmem:[#allocation4] sm:$0xff]
    %v805 = vld [vmem:[#allocation4 + $0x8] sm:$0xff]
    %v806 = vld [vmem:[#allocation4 + $0x10] sm:$0xff]
    %v807 = vld [vmem:[#allocation4 + $0x18] sm:$0xff]
    %v808 = vld [vmem:[#allocation4 + $0x20] sm:$0xff]
    %v809 = vld [vmem:[#allocation4 + $0x28] sm:$0xff]
    %v810 = vld [vmem:[#allocation4 + $0x30] sm:$0xff]
    %v811 = vld [vmem:[#allocation4 + $0x38] sm:$0xff]
    %v812 = vld [vmem:[#allocation4 + $0x40] sm:$0xff]
    %v813 = vld [vmem:[#allocation4 + $0x48] sm:$0xff]
    %v814 = vld [vmem:[#allocation4 + $0x50] sm:$0xff]
    %v815 = vld [vmem:[#allocation4 + $0x58] sm:$0xff]
    %v816 = vld [vmem:[#allocation4 + $0x60] sm:$0xff]
    %v817 = vld [vmem:[#allocation4 + $0x68] sm:$0xff]
    %v818 = vld [vmem:[#allocation4 + $0x70] sm:$0xff]
    %v819 = vld [vmem:[#allocation4 + $0x78] sm:$0xff]
    %v820 = vld [vmem:[%s35] sm:$0x3]
    %v822 = vlaneseq
    %v823 = vshrl.u32 %v822, 7
    %v824 = vsub.s32 0, %v823
    %v825 = vrot.slane %v820, %v824
    %v826 = vlaneseq
    %v827 = vshrl.u32 %v826, 7
    %v828 = vsub.s32 1, %v827
    %v829 = vrot.slane %v820, %v828
    %v848 = vunpack.c.l.b16 %v804
    %v849 = vunpack.c.h.b16 %v804
    %v850 = vunpack.c.l.b16 %v805
    %v851 = vunpack.c.h.b16 %v805
    %v852 = vunpack.c.l.b16 %v806
    %v853 = vunpack.c.h.b16 %v806
    %v854 = vunpack.c.l.b16 %v807
    %v855 = vunpack.c.h.b16 %v807
    %v856 = vunpack.c.l.b16 %v808
    %v857 = vunpack.c.h.b16 %v808
    %v858 = vunpack.c.l.b16 %v809
    %v859 = vunpack.c.h.b16 %v809
    %v860 = vunpack.c.l.b16 %v810
    %v861 = vunpack.c.h.b16 %v810
    %v862 = vunpack.c.l.b16 %v811
    %v863 = vunpack.c.h.b16 %v811
    %v864 = vunpack.c.l.b16 %v812
    %v865 = vunpack.c.h.b16 %v812
    %v866 = vunpack.c.l.b16 %v813
    %v867 = vunpack.c.h.b16 %v813
    %v868 = vunpack.c.l.b16 %v814
    %v869 = vunpack.c.h.b16 %v814
    %v870 = vunpack.c.l.b16 %v815
    %v871 = vunpack.c.h.b16 %v815
    %v872 = vunpack.c.l.b16 %v816
    %v873 = vunpack.c.h.b16 %v816
    %v874 = vunpack.c.l.b16 %v817
    %v875 = vunpack.c.h.b16 %v817
    %v876 = vunpack.c.l.b16 %v818
    %v877 = vunpack.c.h.b16 %v818
    %v878 = vunpack.c.l.b16 %v819
    %v879 = vunpack.c.h.b16 %v819
    %v880 = vpack.c.b16 %v850, %v848
    %v881 = vpack.c.b16 %v851, %v849
    %v882 = vpack.c.b16 %v854, %v852
    %v883 = vpack.c.b16 %v855, %v853
    %v884 = vpack.c.b16 %v858, %v856
    %v885 = vpack.c.b16 %v859, %v857
    %v886 = vpack.c.b16 %v862, %v860
    %v887 = vpack.c.b16 %v863, %v861
    %v888 = vpack.c.b16 %v866, %v864
    %v889 = vpack.c.b16 %v867, %v865
    %v890 = vpack.c.b16 %v870, %v868
    %v891 = vpack.c.b16 %v871, %v869
    %v892 = vpack.c.b16 %v874, %v872
    %v893 = vpack.c.b16 %v875, %v873
    %v894 = vpack.c.b16 %v878, %v876
    %v895 = vpack.c.b16 %v879, %v877
    %912 = vmatprep.subr.bf16.mxu0 %v881
    %913 = vmatpush1.bf16.msra.mxu0 %v880
    %914 = vmatprep.subr.bf16.mxu0 %v883
    %915 = vmatpush1.bf16.msra.mxu0 %v882
    %916 = vmatprep.subr.bf16.mxu0 %v885
    %917 = vmatpush1.bf16.msra.mxu0 %v884
    %918 = vmatprep.subr.bf16.mxu0 %v887
    %919 = vmatpush1.bf16.msra.mxu0 %v886
    %920 = vmatprep.subr.bf16.mxu0 %v889
    %921 = vmatpush1.bf16.msra.mxu0 %v888
    %922 = vmatprep.subr.bf16.mxu0 %v891
    %923 = vmatpush1.bf16.msra.mxu0 %v890
    %924 = vmatprep.subr.bf16.mxu0 %v893
    %925 = vmatpush1.bf16.msra.mxu0 %v892
    %926 = vmatprep.subr.bf16.mxu0 %v895
    %927 = vmatpush1.bf16.msra.mxu0 %v894
    %928 = vmatprep.subr.bf16.mxu0 0
    %929 = vmatpush1.bf16.msra.mxu0 0
    %930 = vmatprep.subr.bf16.mxu0 0
    %931 = vmatpush1.bf16.msra.mxu0 0
    %932 = vmatprep.subr.bf16.mxu0 0
    %933 = vmatpush1.bf16.msra.mxu0 0
    %934 = vmatprep.subr.bf16.mxu0 0
    %935 = vmatpush1.bf16.msra.mxu0 0
    %936 = vmatprep.subr.bf16.mxu0 0
    %937 = vmatpush1.bf16.msra.mxu0 0
    %938 = vmatprep.subr.bf16.mxu0 0
    %939 = vmatpush1.bf16.msra.mxu0 0
    %940 = vmatprep.subr.bf16.mxu0 0
    %941 = vmatpush1.bf16.msra.mxu0 0
    %942 = vmatprep.subr.bf16.mxu0 0
    %943 = vmatpush1.bf16.msra.mxu0 0
    %944 = vmatprep.mubr.bf16.mxu0 0
    %945 = vmatmul.mubr.bf16.gmra.mrb[0].mxu0 %v803
    %v946 = vpop.f32.mrb[0].mxu0
    %v947 = vadd.f32 %v825, %v946
    %v948 = vpop.f32.mrb[0].mxu0
    %v949 = vadd.f32 %v829, %v948
    %v950 = vpop.f32.mrb[0].mxu0
    %v951 = vadd.f32 %v825, %v950
    %v952 = vpop.f32.mrb[0].mxu0
    %v953 = vadd.f32 %v829, %v952
    %954 = vdwg.mxu0
    %v955 = vpack.c.bf16 %v646, %v645
    %v956 = vld [vmem:[#allocation6] sm:$0xff]
    %v957 = vld [vmem:[#allocation6 + $0x8] sm:$0xff]
    %v958 = vld [vmem:[#allocation6 + $0x10] sm:$0xff]
    %v959 = vld [vmem:[#allocation6 + $0x18] sm:$0xff]
    %v960 = vld [vmem:[#allocation6 + $0x20] sm:$0xff]
    %v961 = vld [vmem:[#allocation6 + $0x28] sm:$0xff]
    %v962 = vld [vmem:[#allocation6 + $0x30] sm:$0xff]
    %v963 = vld [vmem:[#allocation6 + $0x38] sm:$0xff]
    %v964 = vld [vmem:[#allocation6 + $0x40] sm:$0xff]
    %v965 = vld [vmem:[#allocation6 + $0x48] sm:$0xff]
    %v966 = vld [vmem:[#allocation6 + $0x50] sm:$0xff]
    %v967 = vld [vmem:[#allocation6 + $0x58] sm:$0xff]
    %v968 = vld [vmem:[#allocation6 + $0x60] sm:$0xff]
    %v969 = vld [vmem:[#allocation6 + $0x68] sm:$0xff]
    %v970 = vld [vmem:[#allocation6 + $0x70] sm:$0xff]
    %v971 = vld [vmem:[#allocation6 + $0x78] sm:$0xff]
    %v972 = vld [vmem:[%s39] sm:$0x3]
    %v974 = vlaneseq
    %v975 = vshrl.u32 %v974, 7
    %v976 = vsub.s32 0, %v975
    %v977 = vrot.slane %v972, %v976
    %v978 = vlaneseq
    %v979 = vshrl.u32 %v978, 7
    %v980 = vsub.s32 1, %v979
    %v981 = vrot.slane %v972, %v980
    %v1000 = vunpack.c.l.b16 %v956
    %v1001 = vunpack.c.h.b16 %v956
    %v1002 = vunpack.c.l.b16 %v957
    %v1003 = vunpack.c.h.b16 %v957
    %v1004 = vunpack.c.l.b16 %v958
    %v1005 = vunpack.c.h.b16 %v958
    %v1006 = vunpack.c.l.b16 %v959
    %v1007 = vunpack.c.h.b16 %v959
    %v1008 = vunpack.c.l.b16 %v960
    %v1009 = vunpack.c.h.b16 %v960
    %v1010 = vunpack.c.l.b16 %v961
    %v1011 = vunpack.c.h.b16 %v961
    %v1012 = vunpack.c.l.b16 %v962
    %v1013 = vunpack.c.h.b16 %v962
    %v1014 = vunpack.c.l.b16 %v963
    %v1015 = vunpack.c.h.b16 %v963
    %v1016 = vunpack.c.l.b16 %v964
    %v1017 = vunpack.c.h.b16 %v964
    %v1018 = vunpack.c.l.b16 %v965
    %v1019 = vunpack.c.h.b16 %v965
    %v1020 = vunpack.c.l.b16 %v966
    %v1021 = vunpack.c.h.b16 %v966
    %v1022 = vunpack.c.l.b16 %v967
    %v1023 = vunpack.c.h.b16 %v967
    %v1024 = vunpack.c.l.b16 %v968
    %v1025 = vunpack.c.h.b16 %v968
    %v1026 = vunpack.c.l.b16 %v969
    %v1027 = vunpack.c.h.b16 %v969
    %v1028 = vunpack.c.l.b16 %v970
    %v1029 = vunpack.c.h.b16 %v970
    %v1030 = vunpack.c.l.b16 %v971
    %v1031 = vunpack.c.h.b16 %v971
    %v1032 = vpack.c.b16 %v1002, %v1000
    %v1033 = vpack.c.b16 %v1003, %v1001
    %v1034 = vpack.c.b16 %v1006, %v1004
    %v1035 = vpack.c.b16 %v1007, %v1005
    %v1036 = vpack.c.b16 %v1010, %v1008
    %v1037 = vpack.c.b16 %v1011, %v1009
    %v1038 = vpack.c.b16 %v1014, %v1012
    %v1039 = vpack.c.b16 %v1015, %v1013
    %v1040 = vpack.c.b16 %v1018, %v1016
    %v1041 = vpack.c.b16 %v1019, %v1017
    %v1042 = vpack.c.b16 %v1022, %v1020
    %v1043 = vpack.c.b16 %v1023, %v1021
    %v1044 = vpack.c.b16 %v1026, %v1024
    %v1045 = vpack.c.b16 %v1027, %v1025
    %v1046 = vpack.c.b16 %v1030, %v1028
    %v1047 = vpack.c.b16 %v1031, %v1029
    %1064 = vmatprep.subr.bf16.mxu0 %v1033
    %1065 = vmatpush1.bf16.msra.mxu0 %v1032
    %1066 = vmatprep.subr.bf16.mxu0 %v1035
    %1067 = vmatpush1.bf16.msra.mxu0 %v1034
    %1068 = vmatprep.subr.bf16.mxu0 %v1037
    %1069 = vmatpush1.bf16.msra.mxu0 %v1036
    %1070 = vmatprep.subr.bf16.mxu0 %v1039
    %1071 = vmatpush1.bf16.msra.mxu0 %v1038
    %1072 = vmatprep.subr.bf16.mxu0 %v1041
    %1073 = vmatpush1.bf16.msra.mxu0 %v1040
    %1074 = vmatprep.subr.bf16.mxu0 %v1043
    %1075 = vmatpush1.bf16.msra.mxu0 %v1042
    %1076 = vmatprep.subr.bf16.mxu0 %v1045
    %1077 = vmatpush1.bf16.msra.mxu0 %v1044
    %1078 = vmatprep.subr.bf16.mxu0 %v1047
    %1079 = vmatpush1.bf16.msra.mxu0 %v1046
    %1080 = vmatprep.subr.bf16.mxu0 0
    %1081 = vmatpush1.bf16.msra.mxu0 0
    %1082 = vmatprep.subr.bf16.mxu0 0
    %1083 = vmatpush1.bf16.msra.mxu0 0
    %1084 = vmatprep.subr.bf16.mxu0 0
    %1085 = vmatpush1.bf16.msra.mxu0 0
    %1086 = vmatprep.subr.bf16.mxu0 0
    %1087 = vmatpush1.bf16.msra.mxu0 0
    %1088 = vmatprep.subr.bf16.mxu0 0
    %1089 = vmatpush1.bf16.msra.mxu0 0
    %1090 = vmatprep.subr.bf16.mxu0 0
    %1091 = vmatpush1.bf16.msra.mxu0 0
    %1092 = vmatprep.subr.bf16.mxu0 0
    %1093 = vmatpush1.bf16.msra.mxu0 0
    %1094 = vmatprep.subr.bf16.mxu0 0
    %1095 = vmatpush1.bf16.msra.mxu0 0
    %1096 = vmatprep.mubr.bf16.mxu0 0
    %1097 = vmatmul.mubr.bf16.gmra.mrb[0].mxu0 %v955
    %v1098 = vpop.f32.mrb[0].mxu0
    %v1099 = vadd.f32 %v977, %v1098
    %v1100 = vpop.f32.mrb[0].mxu0
    %v1101 = vadd.f32 %v981, %v1100
    %v1102 = vpop.f32.mrb[0].mxu0
    %v1103 = vadd.f32 %v977, %v1102
    %v1104 = vpop.f32.mrb[0].mxu0
    %v1105 = vadd.f32 %v981, %v1104
    %1106 = vdwg.mxu0
    %v1107 = vpack.c.bf16 %v799, %v799
    %v1108 = vpack.c.bf16 %v801, %v801
    %v1109 = vpack.c.bf16 %v947, %v947
    %v1110 = vpack.c.bf16 %v951, %v951
    %v1111 = vpack.c.bf16 %v1099, %v1099
    %v1112 = vpack.c.bf16 %v1103, %v1103
    %1113 = vmatprep.subr.bf16.mxu0 0
    %1114 = vmatpush1.bf16.xpose.msra.mxu0 %v1109
    %1115 = vmatprep.subr.bf16.mxu0 0
    %1116 = vmatpush1.bf16.xpose.msra.mxu0 0
    %1117 = vmatprep.subr.bf16.mxu0 0
    %1118 = vmatpush1.bf16.xpose.msra.mxu0 0
    %1119 = vmatprep.subr.bf16.mxu0 0
    %1120 = vmatpush1.bf16.xpose.msra.mxu0 0
    %1121 = vmatprep.subr.bf16.mxu0 0
    %1122 = vmatpush1.bf16.xpose.msra.mxu0 0
    %1123 = vmatprep.subr.bf16.mxu0 0
    %1124 = vmatpush1.bf16.xpose.msra.mxu0 0
    %1125 = vmatprep.subr.bf16.mxu0 0
    %1126 = vmatpush1.bf16.xpose.msra.mxu0 0
    %1127 = vmatprep.subr.bf16.mxu0 0
    %1128 = vmatpush1.bf16.xpose.msra.mxu0 0
    %1129 = vmatprep.subr.bf16.mxu0 0
    %1130 = vmatpush1.bf16.xpose.msra.mxu0 0
    %1131 = vmatprep.subr.bf16.mxu0 0
    %1132 = vmatpush1.bf16.xpose.msra.mxu0 0
    %1133 = vmatprep.subr.bf16.mxu0 0
    %1134 = vmatpush1.bf16.xpose.msra.mxu0 0
    %1135 = vmatprep.subr.bf16.mxu0 0
    %1136 = vmatpush1.bf16.xpose.msra.mxu0 0
    %1137 = vmatprep.subr.bf16.mxu0 0
    %1138 = vmatpush1.bf16.xpose.msra.mxu0 0
    %1139 = vmatprep.subr.bf16.mxu0 0
    %1140 = vmatpush1.bf16.xpose.msra.mxu0 0
    %1141 = vmatprep.subr.bf16.mxu0 0
    %1142 = vmatpush1.bf16.xpose.msra.mxu0 0
    %1143 = vmatprep.subr.bf16.mxu0 0
    %1144 = vmatpush1.bf16.xpose.msra.mxu0 0
    %1145 = vmatprep.mubr.bf16.mxu0 0
    %1146 = vmatmul.mubr.bf16.gmra.mrb[0].mxu0 %v1107
    %v1147 = vpop.f32.mrb[0].mxu0
    %v1148 = vadd.f32 0.0, %v1147
    %v1149 = vpop.f32.mrb[0].mxu0
    %v1150 = vpop.f32.mrb[0].mxu0
    %v1151 = vpop.f32.mrb[0].mxu0
    %1152 = vdwg.mxu0
    %1153 = vmatprep.subr.bf16.mxu0 0
    %1154 = vmatpush1.bf16.xpose.msra.mxu0 %v1110
    %1155 = vmatprep.subr.bf16.mxu0 0
    %1156 = vmatpush1.bf16.xpose.msra.mxu0 0
    %1157 = vmatprep.subr.bf16.mxu0 0
    %1158 = vmatpush1.bf16.xpose.msra.mxu0 0
    %1159 = vmatprep.subr.bf16.mxu0 0
    %1160 = vmatpush1.bf16.xpose.msra.mxu0 0
    %1161 = vmatprep.subr.bf16.mxu0 0
    %1162 = vmatpush1.bf16.xpose.msra.mxu0 0
    %1163 = vmatprep.subr.bf16.mxu0 0
    %1164 = vmatpush1.bf16.xpose.msra.mxu0 0
    %1165 = vmatprep.subr.bf16.mxu0 0
    %1166 = vmatpush1.bf16.xpose.msra.mxu0 0
    %1167 = vmatprep.subr.bf16.mxu0 0
    %1168 = vmatpush1.bf16.xpose.msra.mxu0 0
    %1169 = vmatprep.subr.bf16.mxu0 0
    %1170 = vmatpush1.bf16.xpose.msra.mxu0 0
    %1171 = vmatprep.subr.bf16.mxu0 0
    %1172 = vmatpush1.bf16.xpose.msra.mxu0 0
    %1173 = vmatprep.subr.bf16.mxu0 0
    %1174 = vmatpush1.bf16.xpose.msra.mxu0 0
    %1175 = vmatprep.subr.bf16.mxu0 0
    %1176 = vmatpush1.bf16.xpose.msra.mxu0 0
    %1177 = vmatprep.subr.bf16.mxu0 0
    %1178 = vmatpush1.bf16.xpose.msra.mxu0 0
    %1179 = vmatprep.subr.bf16.mxu0 0
    %1180 = vmatpush1.bf16.xpose.msra.mxu0 0
    %1181 = vmatprep.subr.bf16.mxu0 0
    %1182 = vmatpush1.bf16.xpose.msra.mxu0 0
    %1183 = vmatprep.subr.bf16.mxu0 0
    %1184 = vmatpush1.bf16.xpose.msra.mxu0 0
    %1185 = vmatprep.mubr.bf16.mxu0 0
    %1186 = vmatmul.mubr.bf16.gmra.mrb[0].mxu0 %v1108
    %v1187 = vpop.f32.mrb[0].mxu0
    %v1188 = vadd.f32 0.0, %v1187
    %v1189 = vpop.f32.mrb[0].mxu0
    %v1190 = vpop.f32.mrb[0].mxu0
    %v1191 = vpop.f32.mrb[0].mxu0
    %1192 = vdwg.mxu0
    %vm1193 = vcmask 64512
    %v1194 = vsel %vm1193, %v1148, -inf
    %1195 = vmax.xlane.f32.xlu0 %v1194
    %v1196 = vpop.xlane.xlu0 %1195
    %v1197 = vsel %vm1193, %v1188, -inf
    %1198 = vmax.xlane.f32.xlu0 %v1197
    %v1199 = vpop.xlane.xlu0 %1198
    %v1200 = vsub.f32 %v1148, %v1196
    %v1201 = vsub.f32 %v1188, %v1199
    %v1202 = vmul.f32 %v1200, 1.442695
    %v1203 = vpow.pop %v1202
    %v1204 = vmul.f32 %v1201, 1.442695
    %v1205 = vpow.pop %v1204
    %v1206 = vsel %vm1193, %v1203, 0.0
    %1207 = vadd.xlane.f32.xlu0 %v1206
    %v1208 = vpop.xlane.xlu0 %1207
    %v1209 = vsel %vm1193, %v1205, 0.0
    %1210 = vadd.xlane.f32.xlu0 %v1209
    %v1211 = vpop.xlane.xlu0 %1210
    %v1212 = vrcp.pop %v1208
    %v1213 = vmul.f32 %v1203, %v1212
    %v1214 = vrcp.pop %v1211
    %v1215 = vmul.f32 %v1205, %v1214
    %v1216 = vpack.c.bf16 %v1213, %v1213
    %v1217 = vpack.c.bf16 %v1215, %v1215
    %v1219 = vsel %vm1193, %v1216, 0
    %vm1221 = vcmask 1043456
    %v1223 = vsel %vm1221, %v1111, 0
    %1225 = vmatprep.subr.bf16.mxu0 0
    %1226 = vmatpush1.bf16.msra.mxu0 %v1223
    %1227 = vmatprep.subr.bf16.mxu0 0
    %1228 = vmatpush1.bf16.msra.mxu0 0
    %1229 = vmatprep.subr.bf16.mxu0 0
    %1230 = vmatpush1.bf16.msra.mxu0 0
    %1231 = vmatprep.subr.bf16.mxu0 0
    %1232 = vmatpush1.bf16.msra.mxu0 0
    %1233 = vmatprep.subr.bf16.mxu0 0
    %1234 = vmatpush1.bf16.msra.mxu0 0
    %1235 = vmatprep.subr.bf16.mxu0 0
    %1236 = vmatpush1.bf16.msra.mxu0 0
    %1237 = vmatprep.subr.bf16.mxu0 0
    %1238 = vmatpush1.bf16.msra.mxu0 0
    %1239 = vmatprep.subr.bf16.mxu0 0
    %1240 = vmatpush1.bf16.msra.mxu0 0
    %1241 = vmatprep.subr.bf16.mxu0 0
    %1242 = vmatpush1.bf16.msra.mxu0 0
    %1243 = vmatprep.subr.bf16.mxu0 0
    %1244 = vmatpush1.bf16.msra.mxu0 0
    %1245 = vmatprep.subr.bf16.mxu0 0
    %1246 = vmatpush1.bf16.msra.mxu0 0
    %1247 = vmatprep.subr.bf16.mxu0 0
    %1248 = vmatpush1.bf16.msra.mxu0 0
    %1249 = vmatprep.subr.bf16.mxu0 0
    %1250 = vmatpush1.bf16.msra.mxu0 0
    %1251 = vmatprep.subr.bf16.mxu0 0
    %1252 = vmatpush1.bf16.msra.mxu0 0
    %1253 = vmatprep.subr.bf16.mxu0 0
    %1254 = vmatpush1.bf16.msra.mxu0 0
    %1255 = vmatprep.subr.bf16.mxu0 0
    %1256 = vmatpush1.bf16.msra.mxu0 0
    %1257 = vmatprep.mubr.bf16.mxu0 0
    %1258 = vmatmul.mubr.bf16.gmra.mrb[0].mxu0 %v1219
    %v1259 = vpop.f32.mrb[0].mxu0
    %v1260 = vadd.f32 0.0, %v1259
    %v1261 = vpop.f32.mrb[0].mxu0
    %v1262 = vpop.f32.mrb[0].mxu0
    %v1263 = vpop.f32.mrb[0].mxu0
    %1264 = vdwg.mxu0
    %v1266 = vsel %vm1193, %v1217, 0
    %v1269 = vsel %vm1221, %v1112, 0
    %1271 = vmatprep.subr.bf16.mxu0 0
    %1272 = vmatpush1.bf16.msra.mxu0 %v1269
    %1273 = vmatprep.subr.bf16.mxu0 0
    %1274 = vmatpush1.bf16.msra.mxu0 0
    %1275 = vmatprep.subr.bf16.mxu0 0
    %1276 = vmatpush1.bf16.msra.mxu0 0
    %1277 = vmatprep.subr.bf16.mxu0 0
    %1278 = vmatpush1.bf16.msra.mxu0 0
    %1279 = vmatprep.subr.bf16.mxu0 0
    %1280 = vmatpush1.bf16.msra.mxu0 0
    %1281 = vmatprep.subr.bf16.mxu0 0
    %1282 = vmatpush1.bf16.msra.mxu0 0
    %1283 = vmatprep.subr.bf16.mxu0 0
    %1284 = vmatpush1.bf16.msra.mxu0 0
    %1285 = vmatprep.subr.bf16.mxu0 0
    %1286 = vmatpush1.bf16.msra.mxu0 0
    %1287 = vmatprep.subr.bf16.mxu0 0
    %1288 = vmatpush1.bf16.msra.mxu0 0
    %1289 = vmatprep.subr.bf16.mxu0 0
    %1290 = vmatpush1.bf16.msra.mxu0 0
    %1291 = vmatprep.subr.bf16.mxu0 0
    %1292 = vmatpush1.bf16.msra.mxu0 0
    %1293 = vmatprep.subr.bf16.mxu0 0
    %1294 = vmatpush1.bf16.msra.mxu0 0
    %1295 = vmatprep.subr.bf16.mxu0 0
    %1296 = vmatpush1.bf16.msra.mxu0 0
    %1297 = vmatprep.subr.bf16.mxu0 0
    %1298 = vmatpush1.bf16.msra.mxu0 0
    %1299 = vmatprep.subr.bf16.mxu0 0
    %1300 = vmatpush1.bf16.msra.mxu0 0
    %1301 = vmatprep.subr.bf16.mxu0 0
    %1302 = vmatpush1.bf16.msra.mxu0 0
    %1303 = vmatprep.mubr.bf16.mxu0 0
    %1304 = vmatmul.mubr.bf16.gmra.mrb[0].mxu0 %v1266
    %v1305 = vpop.f32.mrb[0].mxu0
    %v1306 = vadd.f32 0.0, %v1305
    %v1307 = vpop.f32.mrb[0].mxu0
    %v1308 = vpop.f32.mrb[0].mxu0
    %v1309 = vpop.f32.mrb[0].mxu0
    %1310 = vdwg.mxu0
    %v1311 = vpack.c.bf16 %v800, %v800
    %v1312 = vpack.c.bf16 %v802, %v802
    %v1313 = vpack.c.bf16 %v949, %v949
    %v1314 = vpack.c.bf16 %v953, %v953
    %v1315 = vpack.c.bf16 %v1101, %v1101
    %v1316 = vpack.c.bf16 %v1105, %v1105
    %1317 = vmatprep.subr.bf16.mxu0 0
    %1318 = vmatpush1.bf16.xpose.msra.mxu0 %v1313
    %1319 = vmatprep.subr.bf16.mxu0 0
    %1320 = vmatpush1.bf16.xpose.msra.mxu0 0
    %1321 = vmatprep.subr.bf16.mxu0 0
    %1322 = vmatpush1.bf16.xpose.msra.mxu0 0
    %1323 = vmatprep.subr.bf16.mxu0 0
    %1324 = vmatpush1.bf16.xpose.msra.mxu0 0
    %1325 = vmatprep.subr.bf16.mxu0 0
    %1326 = vmatpush1.bf16.xpose.msra.mxu0 0
    %1327 = vmatprep.subr.bf16.mxu0 0
    %1328 = vmatpush1.bf16.xpose.msra.mxu0 0
    %1329 = vmatprep.subr.bf16.mxu0 0
    %1330 = vmatpush1.bf16.xpose.msra.mxu0 0
    %1331 = vmatprep.subr.bf16.mxu0 0
    %1332 = vmatpush1.bf16.xpose.msra.mxu0 0
    %1333 = vmatprep.subr.bf16.mxu0 0
    %1334 = vmatpush1.bf16.xpose.msra.mxu0 0
    %1335 = vmatprep.subr.bf16.mxu0 0
    %1336 = vmatpush1.bf16.xpose.msra.mxu0 0
    %1337 = vmatprep.subr.bf16.mxu0 0
    %1338 = vmatpush1.bf16.xpose.msra.mxu0 0
    %1339 = vmatprep.subr.bf16.mxu0 0
    %1340 = vmatpush1.bf16.xpose.msra.mxu0 0
    %1341 = vmatprep.subr.bf16.mxu0 0
    %1342 = vmatpush1.bf16.xpose.msra.mxu0 0
    %1343 = vmatprep.subr.bf16.mxu0 0
    %1344 = vmatpush1.bf16.xpose.msra.mxu0 0
    %1345 = vmatprep.subr.bf16.mxu0 0
    %1346 = vmatpush1.bf16.xpose.msra.mxu0 0
    %1347 = vmatprep.subr.bf16.mxu0 0
    %1348 = vmatpush1.bf16.xpose.msra.mxu0 0
    %1349 = vmatprep.mubr.bf16.mxu0 0
    %1350 = vmatmul.mubr.bf16.gmra.mrb[0].mxu0 %v1311
    %v1351 = vpop.f32.mrb[0].mxu0
    %v1352 = vadd.f32 0.0, %v1351
    %v1353 = vpop.f32.mrb[0].mxu0
    %v1354 = vpop.f32.mrb[0].mxu0
    %v1355 = vpop.f32.mrb[0].mxu0
    %1356 = vdwg.mxu0
    %1357 = vmatprep.subr.bf16.mxu0 0
    %1358 = vmatpush1.bf16.xpose.msra.mxu0 %v1314
    %1359 = vmatprep.subr.bf16.mxu0 0
    %1360 = vmatpush1.bf16.xpose.msra.mxu0 0
    %1361 = vmatprep.subr.bf16.mxu0 0
    %1362 = vmatpush1.bf16.xpose.msra.mxu0 0
    %1363 = vmatprep.subr.bf16.mxu0 0
    %1364 = vmatpush1.bf16.xpose.msra.mxu0 0
    %1365 = vmatprep.subr.bf16.mxu0 0
    %1366 = vmatpush1.bf16.xpose.msra.mxu0 0
    %1367 = vmatprep.subr.bf16.mxu0 0
    %1368 = vmatpush1.bf16.xpose.msra.mxu0 0
    %1369 = vmatprep.subr.bf16.mxu0 0
    %1370 = vmatpush1.bf16.xpose.msra.mxu0 0
    %1371 = vmatprep.subr.bf16.mxu0 0
    %1372 = vmatpush1.bf16.xpose.msra.mxu0 0
    %1373 = vmatprep.subr.bf16.mxu0 0
    %1374 = vmatpush1.bf16.xpose.msra.mxu0 0
    %1375 = vmatprep.subr.bf16.mxu0 0
    %1376 = vmatpush1.bf16.xpose.msra.mxu0 0
    %1377 = vmatprep.subr.bf16.mxu0 0
    %1378 = vmatpush1.bf16.xpose.msra.mxu0 0
    %1379 = vmatprep.subr.bf16.mxu0 0
    %1380 = vmatpush1.bf16.xpose.msra.mxu0 0
    %1381 = vmatprep.subr.bf16.mxu0 0
    %1382 = vmatpush1.bf16.xpose.msra.mxu0 0
    %1383 = vmatprep.subr.bf16.mxu0 0
    %1384 = vmatpush1.bf16.xpose.msra.mxu0 0
    %1385 = vmatprep.subr.bf16.mxu0 0
    %1386 = vmatpush1.bf16.xpose.msra.mxu0 0
    %1387 = vmatprep.subr.bf16.mxu0 0
    %1388 = vmatpush1.bf16.xpose.msra.mxu0 0
    %1389 = vmatprep.mubr.bf16.mxu0 0
    %1390 = vmatmul.mubr.bf16.gmra.mrb[0].mxu0 %v1312
    %v1391 = vpop.f32.mrb[0].mxu0
    %v1392 = vadd.f32 0.0, %v1391
    %v1393 = vpop.f32.mrb[0].mxu0
    %v1394 = vpop.f32.mrb[0].mxu0
    %v1395 = vpop.f32.mrb[0].mxu0
    %1396 = vdwg.mxu0
    %v1397 = vsel %vm1193, %v1352, -inf
    %1398 = vmax.xlane.f32.xlu0 %v1397
    %v1399 = vpop.xlane.xlu0 %1398
    %v1400 = vsel %vm1193, %v1392, -inf
    %1401 = vmax.xlane.f32.xlu0 %v1400
    %v1402 = vpop.xlane.xlu0 %1401
    %v1403 = vsub.f32 %v1352, %v1399
    %v1404 = vsub.f32 %v1392, %v1402
    %v1405 = vmul.f32 %v1403, 1.442695
    %v1406 = vpow.pop %v1405
    %v1407 = vmul.f32 %v1404, 1.442695
    %v1408 = vpow.pop %v1407
    %v1409 = vsel %vm1193, %v1406, 0.0
    %1410 = vadd.xlane.f32.xlu0 %v1409
    %v1411 = vpop.xlane.xlu0 %1410
    %v1412 = vsel %vm1193, %v1408, 0.0
    %1413 = vadd.xlane.f32.xlu0 %v1412
    %v1414 = vpop.xlane.xlu0 %1413
    %v1415 = vrcp.pop %v1411
    %v1416 = vmul.f32 %v1406, %v1415
    %v1417 = vrcp.pop %v1414
    %v1418 = vmul.f32 %v1408, %v1417
    %v1419 = vpack.c.bf16 %v1416, %v1416
    %v1420 = vpack.c.bf16 %v1418, %v1418
    %v1422 = vsel %vm1193, %v1419, 0
    %v1425 = vsel %vm1221, %v1315, 0
    %1427 = vmatprep.subr.bf16.mxu0 0
    %1428 = vmatpush1.bf16.msra.mxu0 %v1425
    %1429 = vmatprep.subr.bf16.mxu0 0
    %1430 = vmatpush1.bf16.msra.mxu0 0
    %1431 = vmatprep.subr.bf16.mxu0 0
    %1432 = vmatpush1.bf16.msra.mxu0 0
    %1433 = vmatprep.subr.bf16.mxu0 0
    %1434 = vmatpush1.bf16.msra.mxu0 0
    %1435 = vmatprep.subr.bf16.mxu0 0
    %1436 = vmatpush1.bf16.msra.mxu0 0
    %1437 = vmatprep.subr.bf16.mxu0 0
    %1438 = vmatpush1.bf16.msra.mxu0 0
    %1439 = vmatprep.subr.bf16.mxu0 0
    %1440 = vmatpush1.bf16.msra.mxu0 0
    %1441 = vmatprep.subr.bf16.mxu0 0
    %1442 = vmatpush1.bf16.msra.mxu0 0
    %1443 = vmatprep.subr.bf16.mxu0 0
    %1444 = vmatpush1.bf16.msra.mxu0 0
    %1445 = vmatprep.subr.bf16.mxu0 0
    %1446 = vmatpush1.bf16.msra.mxu0 0
    %1447 = vmatprep.subr.bf16.mxu0 0
    %1448 = vmatpush1.bf16.msra.mxu0 0
    %1449 = vmatprep.subr.bf16.mxu0 0
    %1450 = vmatpush1.bf16.msra.mxu0 0
    %1451 = vmatprep.subr.bf16.mxu0 0
    %1452 = vmatpush1.bf16.msra.mxu0 0
    %1453 = vmatprep.subr.bf16.mxu0 0
    %1454 = vmatpush1.bf16.msra.mxu0 0
    %1455 = vmatprep.subr.bf16.mxu0 0
    %1456 = vmatpush1.bf16.msra.mxu0 0
    %1457 = vmatprep.subr.bf16.mxu0 0
    %1458 = vmatpush1.bf16.msra.mxu0 0
    %1459 = vmatprep.mubr.bf16.mxu0 0
    %1460 = vmatmul.mubr.bf16.gmra.mrb[0].mxu0 %v1422
    %v1461 = vpop.f32.mrb[0].mxu0
    %v1462 = vadd.f32 0.0, %v1461
    %v1463 = vpop.f32.mrb[0].mxu0
    %v1464 = vpop.f32.mrb[0].mxu0
    %v1465 = vpop.f32.mrb[0].mxu0
    %1466 = vdwg.mxu0
    %v1468 = vsel %vm1193, %v1420, 0
    %v1471 = vsel %vm1221, %v1316, 0
    %1473 = vmatprep.subr.bf16.mxu0 0
    %1474 = vmatpush1.bf16.msra.mxu0 %v1471
    %1475 = vmatprep.subr.bf16.mxu0 0
    %1476 = vmatpush1.bf16.msra.mxu0 0
    %1477 = vmatprep.subr.bf16.mxu0 0
    %1478 = vmatpush1.bf16.msra.mxu0 0
    %1479 = vmatprep.subr.bf16.mxu0 0
    %1480 = vmatpush1.bf16.msra.mxu0 0
    %1481 = vmatprep.subr.bf16.mxu0 0
    %1482 = vmatpush1.bf16.msra.mxu0 0
    %1483 = vmatprep.subr.bf16.mxu0 0
    %1484 = vmatpush1.bf16.msra.mxu0 0
    %1485 = vmatprep.subr.bf16.mxu0 0
    %1486 = vmatpush1.bf16.msra.mxu0 0
    %1487 = vmatprep.subr.bf16.mxu0 0
    %1488 = vmatpush1.bf16.msra.mxu0 0
    %1489 = vmatprep.subr.bf16.mxu0 0
    %1490 = vmatpush1.bf16.msra.mxu0 0
    %1491 = vmatprep.subr.bf16.mxu0 0
    %1492 = vmatpush1.bf16.msra.mxu0 0
    %1493 = vmatprep.subr.bf16.mxu0 0
    %1494 = vmatpush1.bf16.msra.mxu0 0
    %1495 = vmatprep.subr.bf16.mxu0 0
    %1496 = vmatpush1.bf16.msra.mxu0 0
    %1497 = vmatprep.subr.bf16.mxu0 0
    %1498 = vmatpush1.bf16.msra.mxu0 0
    %1499 = vmatprep.subr.bf16.mxu0 0
    %1500 = vmatpush1.bf16.msra.mxu0 0
    %1501 = vmatprep.subr.bf16.mxu0 0
    %1502 = vmatpush1.bf16.msra.mxu0 0
    %1503 = vmatprep.subr.bf16.mxu0 0
    %1504 = vmatpush1.bf16.msra.mxu0 0
    %1505 = vmatprep.mubr.bf16.mxu0 0
    %1506 = vmatmul.mubr.bf16.gmra.mrb[0].mxu0 %v1468
    %v1507 = vpop.f32.mrb[0].mxu0
    %v1508 = vadd.f32 0.0, %v1507
    %v1509 = vpop.f32.mrb[0].mxu0
    %v1510 = vpop.f32.mrb[0].mxu0
    %v1511 = vpop.f32.mrb[0].mxu0
    %1512 = vdwg.mxu0
    %v1513 = vpack.c.bf16 %v1306, %v1260
    %v1514 = vpack.c.bf16 %v1508, %v1462
    %v1515 = vld [vmem:[#allocation7] sm:$0xf]
    %v1516 = vld [vmem:[#allocation7 + $0x4] sm:$0xf]
    %v1517 = vld [vmem:[#allocation7 + $0x8] sm:$0xf]
    %v1518 = vld [vmem:[#allocation7 + $0xc] sm:$0xf]
    %v1519 = vld [vmem:[#allocation7 + $0x10] sm:$0xf]
    %v1520 = vld [vmem:[#allocation7 + $0x14] sm:$0xf]
    %v1521 = vld [vmem:[#allocation7 + $0x18] sm:$0xf]
    %v1522 = vld [vmem:[#allocation7 + $0x1c] sm:$0xf]
    %v1523 = vld [vmem:[#allocation7 + $0x20] sm:$0xf]
    %v1524 = vld [vmem:[#allocation7 + $0x24] sm:$0xf]
    %v1525 = vld [vmem:[#allocation7 + $0x28] sm:$0xf]
    %v1526 = vld [vmem:[#allocation7 + $0x2c] sm:$0xf]
    %v1527 = vld [vmem:[#allocation7 + $0x30] sm:$0xf]
    %v1528 = vld [vmem:[#allocation7 + $0x34] sm:$0xf]
    %v1529 = vld [vmem:[#allocation7 + $0x38] sm:$0xf]
    %v1530 = vld [vmem:[#allocation7 + $0x3c] sm:$0xf]
    %v1531 = vld [vmem:[#allocation7 + $0x40] sm:$0xf]
    %v1532 = vld [vmem:[#allocation7 + $0x44] sm:$0xf]
    %v1533 = vld [vmem:[#allocation7 + $0x48] sm:$0xf]
    %v1534 = vld [vmem:[#allocation7 + $0x4c] sm:$0xf]
    %v1535 = vld [vmem:[#allocation7 + $0x50] sm:$0xf]
    %v1536 = vld [vmem:[#allocation7 + $0x54] sm:$0xf]
    %v1537 = vld [vmem:[#allocation7 + $0x58] sm:$0xf]
    %v1538 = vld [vmem:[#allocation7 + $0x5c] sm:$0xf]
    %v1539 = vld [vmem:[#allocation7 + $0x60] sm:$0xf]
    %v1540 = vld [vmem:[#allocation7 + $0x64] sm:$0xf]
    %v1541 = vld [vmem:[#allocation7 + $0x68] sm:$0xf]
    %v1542 = vld [vmem:[#allocation7 + $0x6c] sm:$0xf]
    %v1543 = vld [vmem:[#allocation7 + $0x70] sm:$0xf]
    %v1544 = vld [vmem:[#allocation7 + $0x74] sm:$0xf]
    %v1545 = vld [vmem:[#allocation7 + $0x78] sm:$0xf]
    %v1546 = vld [vmem:[#allocation7 + $0x7c] sm:$0xf]
    %v1547 = vld [vmem:[%s43] sm:$0x1]
    %v1549 = vlaneseq
    %v1550 = vshrl.u32 %v1549, 7
    %v1551 = vsub.s32 0, %v1550
    %v1552 = vrot.slane %v1547, %v1551
    %v1586 = vunpack.c.l.b16 %v1515
    %v1587 = vunpack.c.l.b16 %v1516
    %v1588 = vunpack.c.l.b16 %v1517
    %v1589 = vunpack.c.l.b16 %v1518
    %v1590 = vunpack.c.l.b16 %v1519
    %v1591 = vunpack.c.l.b16 %v1520
    %v1592 = vunpack.c.l.b16 %v1521
    %v1593 = vunpack.c.l.b16 %v1522
    %v1594 = vunpack.c.l.b16 %v1523
    %v1595 = vunpack.c.l.b16 %v1524
    %v1596 = vunpack.c.l.b16 %v1525
    %v1597 = vunpack.c.l.b16 %v1526
    %v1598 = vunpack.c.l.b16 %v1527
    %v1599 = vunpack.c.l.b16 %v1528
    %v1600 = vunpack.c.l.b16 %v1529
    %v1601 = vunpack.c.l.b16 %v1530
    %v1602 = vunpack.c.l.b16 %v1531
    %v1603 = vunpack.c.l.b16 %v1532
    %v1604 = vunpack.c.l.b16 %v1533
    %v1605 = vunpack.c.l.b16 %v1534
    %v1606 = vunpack.c.l.b16 %v1535
    %v1607 = vunpack.c.l.b16 %v1536
    %v1608 = vunpack.c.l.b16 %v1537
    %v1609 = vunpack.c.l.b16 %v1538
    %v1610 = vunpack.c.l.b16 %v1539
    %v1611 = vunpack.c.l.b16 %v1540
    %v1612 = vunpack.c.l.b16 %v1541
    %v1613 = vunpack.c.l.b16 %v1542
    %v1614 = vunpack.c.l.b16 %v1543
    %v1615 = vunpack.c.l.b16 %v1544
    %v1616 = vunpack.c.l.b16 %v1545
    %v1617 = vunpack.c.l.b16 %v1546
    %v1618 = vpack.c.b16 %v1587, %v1586
    %v1619 = vpack.c.b16 %v1589, %v1588
    %v1620 = vpack.c.b16 %v1591, %v1590
    %v1621 = vpack.c.b16 %v1593, %v1592
    %v1622 = vpack.c.b16 %v1595, %v1594
    %v1623 = vpack.c.b16 %v1597, %v1596
    %v1624 = vpack.c.b16 %v1599, %v1598
    %v1625 = vpack.c.b16 %v1601, %v1600
    %v1626 = vpack.c.b16 %v1603, %v1602
    %v1627 = vpack.c.b16 %v1605, %v1604
    %v1628 = vpack.c.b16 %v1607, %v1606
    %v1629 = vpack.c.b16 %v1609, %v1608
    %v1630 = vpack.c.b16 %v1611, %v1610
    %v1631 = vpack.c.b16 %v1613, %v1612
    %v1632 = vpack.c.b16 %v1615, %v1614
    %v1633 = vpack.c.b16 %v1617, %v1616
    %1650 = vmatprep.subr.bf16.mxu0 0
    %1651 = vmatpush1.bf16.msra.mxu0 %v1618
    %1652 = vmatprep.subr.bf16.mxu0 0
    %1653 = vmatpush1.bf16.msra.mxu0 %v1619
    %1654 = vmatprep.subr.bf16.mxu0 0
    %1655 = vmatpush1.bf16.msra.mxu0 %v1620
    %1656 = vmatprep.subr.bf16.mxu0 0
    %1657 = vmatpush1.bf16.msra.mxu0 %v1621
    %1658 = vmatprep.subr.bf16.mxu0 0
    %1659 = vmatpush1.bf16.msra.mxu0 %v1622
    %1660 = vmatprep.subr.bf16.mxu0 0
    %1661 = vmatpush1.bf16.msra.mxu0 %v1623
    %1662 = vmatprep.subr.bf16.mxu0 0
    %1663 = vmatpush1.bf16.msra.mxu0 %v1624
    %1664 = vmatprep.subr.bf16.mxu0 0
    %1665 = vmatpush1.bf16.msra.mxu0 %v1625
    %1666 = vmatprep.subr.bf16.mxu0 0
    %1667 = vmatpush1.bf16.msra.mxu0 %v1626
    %1668 = vmatprep.subr.bf16.mxu0 0
    %1669 = vmatpush1.bf16.msra.mxu0 %v1627
    %1670 = vmatprep.subr.bf16.mxu0 0
    %1671 = vmatpush1.bf16.msra.mxu0 %v1628
    %1672 = vmatprep.subr.bf16.mxu0 0
    %1673 = vmatpush1.bf16.msra.mxu0 %v1629
    %1674 = vmatprep.subr.bf16.mxu0 0
    %1675 = vmatpush1.bf16.msra.mxu0 %v1630
    %1676 = vmatprep.subr.bf16.mxu0 0
    %1677 = vmatpush1.bf16.msra.mxu0 %v1631
    %1678 = vmatprep.subr.bf16.mxu0 0
    %1679 = vmatpush1.bf16.msra.mxu0 %v1632
    %1680 = vmatprep.subr.bf16.mxu0 0
    %1681 = vmatpush1.bf16.msra.mxu0 %v1633
    %1682 = vmatprep.mubr.bf16.mxu0 %v1514
    %1683 = vmatmul.mubr.bf16.gmra.mrb[0].mxu0 %v1513
    %v1684 = vpop.f32.mrb[0].mxu0
    %v1685 = vadd.f32 %v1552, %v1684
    %v1686 = vpop.f32.mrb[0].mxu0
    %v1687 = vpop.f32.mrb[0].mxu0
    %v1688 = vadd.f32 %v1552, %v1687
    %v1689 = vpop.f32.mrb[0].mxu0
    %1690 = vdwg.mxu0
    %v1691 = vld [vmem:[%s45] sm:$0x1]
    %v1692 = vld [vmem:[%s47] sm:$0x1]
    %1693 = vadd.xlane.f32.xlu0 %v1685
    %v1694 = vpop.xlane.xlu0 %1693
    %1695 = vadd.xlane.f32.xlu0 %v1688
    %v1696 = vpop.xlane.xlu0 %1695
    %v1697 = vmul.f32 %v1694, 0.014705882
    %v1698 = vmul.f32 %v1696, 0.014705882
    %v1699 = vmul.f32 %v1685, %v1685
    %v1700 = vmul.f32 %v1688, %v1688
    %1701 = vadd.xlane.f32.xlu0 %v1699
    %v1702 = vpop.xlane.xlu0 %1701
    %1703 = vadd.xlane.f32.xlu0 %v1700
    %v1704 = vpop.xlane.xlu0 %1703
    %v1705 = vmul.f32 %v1702, 0.014705882
    %v1706 = vmul.f32 %v1704, 0.014705882
    %v1707 = vmul.f32 %v1697, %v1697
    %v1708 = vmul.f32 %v1698, %v1698
    %v1709 = vsub.f32 %v1705, %v1707
    %v1710 = vsub.f32 %v1706, %v1708
    %v1711 = vmax.f32 %v1709, 0.0
    %v1712 = vmax.f32 %v1710, 0.0
    %v1713 = vsub.f32 %v1685, %v1697
    %v1714 = vsub.f32 %v1688, %v1698
    %v1715 = vadd.f32 %v1711, 1e-05
    %v1716 = vadd.f32 %v1712, 1e-05
    %v1717 = vrsqrt.pop %v1715
    %v1718 = vrsqrt.pop %v1716
    %v1719 = vmul.f32 %v1713, %v1717
    %v1720 = vmul.f32 %v1714, %v1718
    %v1722 = vlaneseq
    %v1723 = vshrl.u32 %v1722, 7
    %v1724 = vsub.s32 0, %v1723
    %v1725 = vrot.slane %v1691, %v1724
    %v1727 = vmul.f32 %v1719, %v1725
    %v1728 = vmul.f32 %v1720, %v1725
    %v1730 = vlaneseq
    %v1731 = vshrl.u32 %v1730, 7
    %v1732 = vsub.s32 0, %v1731
    %v1733 = vrot.slane %v1692, %v1732
    %v1735 = vadd.f32 %v1727, %v1733
    %v1736 = vadd.f32 %v1728, %v1733
    %v1737 = vld [vmem:[%s49] sm:$0x1]
    %v1738 = vld [vmem:[%s51] sm:$0x1]
    %v1740 = vlaneseq
    %v1741 = vshrl.u32 %v1740, 7
    %v1742 = vsub.s32 0, %v1741
    %v1743 = vrot.slane %v1737, %v1742
    %v1745 = vmul.f32 %v1719, %v1743
    %v1746 = vmul.f32 %v1720, %v1743
    %v1748 = vlaneseq
    %v1749 = vshrl.u32 %v1748, 7
    %v1750 = vsub.s32 0, %v1749
    %v1751 = vrot.slane %v1738, %v1750
    %v1753 = vadd.f32 %v1745, %v1751
    %v1754 = vadd.f32 %v1746, %v1751
    %v1755 = vpack.c.bf16 %v1736, %v1735
    %v1756 = vld [vmem:[#allocation9] sm:$0xf]
    %v1757 = vld [vmem:[#allocation9 + $0x4] sm:$0xf]
    %v1758 = vld [vmem:[#allocation9 + $0x8] sm:$0xf]
    %v1759 = vld [vmem:[#allocation9 + $0xc] sm:$0xf]
    %v1760 = vld [vmem:[#allocation9 + $0x10] sm:$0xf]
    %v1761 = vld [vmem:[#allocation9 + $0x14] sm:$0xf]
    %v1762 = vld [vmem:[#allocation9 + $0x18] sm:$0xf]
    %v1763 = vld [vmem:[#allocation9 + $0x1c] sm:$0xf]
    %v1764 = vld [vmem:[#allocation9 + $0x20] sm:$0xf]
    %v1765 = vld [vmem:[#allocation9 + $0x24] sm:$0xf]
    %v1766 = vld [vmem:[#allocation9 + $0x28] sm:$0xf]
    %v1767 = vld [vmem:[#allocation9 + $0x2c] sm:$0xf]
    %v1768 = vld [vmem:[#allocation9 + $0x30] sm:$0xf]
    %v1769 = vld [vmem:[#allocation9 + $0x34] sm:$0xf]
    %v1770 = vld [vmem:[#allocation9 + $0x38] sm:$0xf]
    %v1771 = vld [vmem:[#allocation9 + $0x3c] sm:$0xf]
    %v1772 = vld [vmem:[%s55] sm:$0x1]
    %v1774 = vlaneseq
    %v1775 = vshrl.u32 %v1774, 7
    %v1776 = vsub.s32 0, %v1775
    %v1777 = vrot.slane %v1772, %v1776
    %v1795 = vunpack.c.l.b16 %v1756
    %v1796 = vunpack.c.l.b16 %v1757
    %v1797 = vunpack.c.l.b16 %v1758
    %v1798 = vunpack.c.l.b16 %v1759
    %v1799 = vunpack.c.l.b16 %v1760
    %v1800 = vunpack.c.l.b16 %v1761
    %v1801 = vunpack.c.l.b16 %v1762
    %v1802 = vunpack.c.l.b16 %v1763
    %v1803 = vunpack.c.l.b16 %v1764
    %v1804 = vunpack.c.l.b16 %v1765
    %v1805 = vunpack.c.l.b16 %v1766
    %v1806 = vunpack.c.l.b16 %v1767
    %v1807 = vunpack.c.l.b16 %v1768
    %v1808 = vunpack.c.l.b16 %v1769
    %v1809 = vunpack.c.l.b16 %v1770
    %v1810 = vunpack.c.l.b16 %v1771
    %v1811 = vpack.c.b16 %v1796, %v1795
    %v1812 = vpack.c.b16 %v1798, %v1797
    %v1813 = vpack.c.b16 %v1800, %v1799
    %v1814 = vpack.c.b16 %v1802, %v1801
    %v1815 = vpack.c.b16 %v1804, %v1803
    %v1816 = vpack.c.b16 %v1806, %v1805
    %v1817 = vpack.c.b16 %v1808, %v1807
    %v1818 = vpack.c.b16 %v1810, %v1809
    %1827 = vmatprep.subr.bf16.mxu0 0
    %1828 = vmatpush1.bf16.msra.mxu0 %v1811
    %1829 = vmatprep.subr.bf16.mxu0 0
    %1830 = vmatpush1.bf16.msra.mxu0 %v1812
    %1831 = vmatprep.subr.bf16.mxu0 0
    %1832 = vmatpush1.bf16.msra.mxu0 %v1813
    %1833 = vmatprep.subr.bf16.mxu0 0
    %1834 = vmatpush1.bf16.msra.mxu0 %v1814
    %1835 = vmatprep.subr.bf16.mxu0 0
    %1836 = vmatpush1.bf16.msra.mxu0 %v1815
    %1837 = vmatprep.subr.bf16.mxu0 0
    %1838 = vmatpush1.bf16.msra.mxu0 %v1816
    %1839 = vmatprep.subr.bf16.mxu0 0
    %1840 = vmatpush1.bf16.msra.mxu0 %v1817
    %1841 = vmatprep.subr.bf16.mxu0 0
    %1842 = vmatpush1.bf16.msra.mxu0 %v1818
    %1843 = vmatprep.subr.bf16.mxu0 0
    %1844 = vmatpush1.bf16.msra.mxu0 0
    %1845 = vmatprep.subr.bf16.mxu0 0
    %1846 = vmatpush1.bf16.msra.mxu0 0
    %1847 = vmatprep.subr.bf16.mxu0 0
    %1848 = vmatpush1.bf16.msra.mxu0 0
    %1849 = vmatprep.subr.bf16.mxu0 0
    %1850 = vmatpush1.bf16.msra.mxu0 0
    %1851 = vmatprep.subr.bf16.mxu0 0
    %1852 = vmatpush1.bf16.msra.mxu0 0
    %1853 = vmatprep.subr.bf16.mxu0 0
    %1854 = vmatpush1.bf16.msra.mxu0 0
    %1855 = vmatprep.subr.bf16.mxu0 0
    %1856 = vmatpush1.bf16.msra.mxu0 0
    %1857 = vmatprep.subr.bf16.mxu0 0
    %1858 = vmatpush1.bf16.msra.mxu0 0
    %1859 = vmatprep.mubr.bf16.mxu0 0
    %1860 = vmatmul.mubr.bf16.gmra.mrb[0].mxu0 %v1755
    %v1861 = vpop.f32.mrb[0].mxu0
    %v1862 = vadd.f32 %v1777, %v1861
    %v1863 = vpop.f32.mrb[0].mxu0
    %v1864 = vpop.f32.mrb[0].mxu0
    %v1865 = vadd.f32 %v1777, %v1864
    %v1866 = vpop.f32.mrb[0].mxu0
    %1867 = vdwg.mxu0
    %v1868 = vmax.f32 %v1862, 0.0
    %v1869 = vmax.f32 %v1865, 0.0
    %v1870 = vadd.f32 %v1868, %v1735
    %v1871 = vadd.f32 %v1869, %v1736
    %v1872 = vpack.c.bf16 %v1871, %v1870
    %v1873 = vld [vmem:[#allocation10] sm:$0xf]
    %v1874 = vld [vmem:[#allocation10 + $0x4] sm:$0xf]
    %v1875 = vld [vmem:[#allocation10 + $0x8] sm:$0xf]
    %v1876 = vld [vmem:[#allocation10 + $0xc] sm:$0xf]
    %v1877 = vld [vmem:[#allocation10 + $0x10] sm:$0xf]
    %v1878 = vld [vmem:[#allocation10 + $0x14] sm:$0xf]
    %v1879 = vld [vmem:[#allocation10 + $0x18] sm:$0xf]
    %v1880 = vld [vmem:[#allocation10 + $0x1c] sm:$0xf]
    %v1881 = vld [vmem:[#allocation10 + $0x20] sm:$0xf]
    %v1882 = vld [vmem:[#allocation10 + $0x24] sm:$0xf]
    %v1883 = vld [vmem:[#allocation10 + $0x28] sm:$0xf]
    %v1884 = vld [vmem:[#allocation10 + $0x2c] sm:$0xf]
    %v1885 = vld [vmem:[#allocation10 + $0x30] sm:$0xf]
    %v1886 = vld [vmem:[#allocation10 + $0x34] sm:$0xf]
    %v1887 = vld [vmem:[#allocation10 + $0x38] sm:$0xf]
    %v1888 = vld [vmem:[#allocation10 + $0x3c] sm:$0xf]
    %v1889 = vld [vmem:[%s59] sm:$0x1]
    %v1891 = vlaneseq
    %v1892 = vshrl.u32 %v1891, 7
    %v1893 = vsub.s32 0, %v1892
    %v1894 = vrot.slane %v1889, %v1893
    %v1912 = vunpack.c.l.b16 %v1873
    %v1913 = vunpack.c.l.b16 %v1874
    %v1914 = vunpack.c.l.b16 %v1875
    %v1915 = vunpack.c.l.b16 %v1876
    %v1916 = vunpack.c.l.b16 %v1877
    %v1917 = vunpack.c.l.b16 %v1878
    %v1918 = vunpack.c.l.b16 %v1879
    %v1919 = vunpack.c.l.b16 %v1880
    %v1920 = vunpack.c.l.b16 %v1881
    %v1921 = vunpack.c.l.b16 %v1882
    %v1922 = vunpack.c.l.b16 %v1883
    %v1923 = vunpack.c.l.b16 %v1884
    %v1924 = vunpack.c.l.b16 %v1885
    %v1925 = vunpack.c.l.b16 %v1886
    %v1926 = vunpack.c.l.b16 %v1887
    %v1927 = vunpack.c.l.b16 %v1888
    %v1928 = vpack.c.b16 %v1913, %v1912
    %v1929 = vpack.c.b16 %v1915, %v1914
    %v1930 = vpack.c.b16 %v1917, %v1916
    %v1931 = vpack.c.b16 %v1919, %v1918
    %v1932 = vpack.c.b16 %v1921, %v1920
    %v1933 = vpack.c.b16 %v1923, %v1922
    %v1934 = vpack.c.b16 %v1925, %v1924
    %v1935 = vpack.c.b16 %v1927, %v1926
    %1944 = vmatprep.subr.bf16.mxu0 0
    %1945 = vmatpush1.bf16.msra.mxu0 %v1928
    %1946 = vmatprep.subr.bf16.mxu0 0
    %1947 = vmatpush1.bf16.msra.mxu0 %v1929
    %1948 = vmatprep.subr.bf16.mxu0 0
    %1949 = vmatpush1.bf16.msra.mxu0 %v1930
    %1950 = vmatprep.subr.bf16.mxu0 0
    %1951 = vmatpush1.bf16.msra.mxu0 %v1931
    %1952 = vmatprep.subr.bf16.mxu0 0
    %1953 = vmatpush1.bf16.msra.mxu0 %v1932
    %1954 = vmatprep.subr.bf16.mxu0 0
    %1955 = vmatpush1.bf16.msra.mxu0 %v1933
    %1956 = vmatprep.subr.bf16.mxu0 0
    %1957 = vmatpush1.bf16.msra.mxu0 %v1934
    %1958 = vmatprep.subr.bf16.mxu0 0
    %1959 = vmatpush1.bf16.msra.mxu0 %v1935
    %1960 = vmatprep.subr.bf16.mxu0 0
    %1961 = vmatpush1.bf16.msra.mxu0 0
    %1962 = vmatprep.subr.bf16.mxu0 0
    %1963 = vmatpush1.bf16.msra.mxu0 0
    %1964 = vmatprep.subr.bf16.mxu0 0
    %1965 = vmatpush1.bf16.msra.mxu0 0
    %1966 = vmatprep.subr.bf16.mxu0 0
    %1967 = vmatpush1.bf16.msra.mxu0 0
    %1968 = vmatprep.subr.bf16.mxu0 0
    %1969 = vmatpush1.bf16.msra.mxu0 0
    %1970 = vmatprep.subr.bf16.mxu0 0
    %1971 = vmatpush1.bf16.msra.mxu0 0
    %1972 = vmatprep.subr.bf16.mxu0 0
    %1973 = vmatpush1.bf16.msra.mxu0 0
    %1974 = vmatprep.subr.bf16.mxu0 0
    %1975 = vmatpush1.bf16.msra.mxu0 0
    %1976 = vmatprep.mubr.bf16.mxu0 0
    %1977 = vmatmul.mubr.bf16.gmra.mrb[0].mxu0 %v1872
    %v1978 = vpop.f32.mrb[0].mxu0
    %v1979 = vadd.f32 %v1894, %v1978
    %v1980 = vpop.f32.mrb[0].mxu0
    %v1981 = vpop.f32.mrb[0].mxu0
    %v1982 = vadd.f32 %v1894, %v1981
    %v1983 = vpop.f32.mrb[0].mxu0
    %1984 = vdwg.mxu0
    %v1985 = vpack.c.bf16 %v1754, %v1753
    %v1986 = vld [vmem:[#allocation12] sm:$0xf]
    %v1987 = vld [vmem:[#allocation12 + $0x4] sm:$0xf]
    %v1988 = vld [vmem:[#allocation12 + $0x8] sm:$0xf]
    %v1989 = vld [vmem:[#allocation12 + $0xc] sm:$0xf]
    %v1990 = vld [vmem:[#allocation12 + $0x10] sm:$0xf]
    %v1991 = vld [vmem:[#allocation12 + $0x14] sm:$0xf]
    %v1992 = vld [vmem:[#allocation12 + $0x18] sm:$0xf]
    %v1993 = vld [vmem:[#allocation12 + $0x1c] sm:$0xf]
    %v1994 = vld [vmem:[#allocation12 + $0x20] sm:$0xf]
    %v1995 = vld [vmem:[#allocation12 + $0x24] sm:$0xf]
    %v1996 = vld [vmem:[#allocation12 + $0x28] sm:$0xf]
    %v1997 = vld [vmem:[#allocation12 + $0x2c] sm:$0xf]
    %v1998 = vld [vmem:[#allocation12 + $0x30] sm:$0xf]
    %v1999 = vld [vmem:[#allocation12 + $0x34] sm:$0xf]
    %v2000 = vld [vmem:[#allocation12 + $0x38] sm:$0xf]
    %v2001 = vld [vmem:[#allocation12 + $0x3c] sm:$0xf]
    %v2002 = vld [vmem:[%s63] sm:$0x1]
    %v2004 = vlaneseq
    %v2005 = vshrl.u32 %v2004, 7
    %v2006 = vsub.s32 0, %v2005
    %v2007 = vrot.slane %v2002, %v2006
    %v2025 = vunpack.c.l.b16 %v1986
    %v2026 = vunpack.c.l.b16 %v1987
    %v2027 = vunpack.c.l.b16 %v1988
    %v2028 = vunpack.c.l.b16 %v1989
    %v2029 = vunpack.c.l.b16 %v1990
    %v2030 = vunpack.c.l.b16 %v1991
    %v2031 = vunpack.c.l.b16 %v1992
    %v2032 = vunpack.c.l.b16 %v1993
    %v2033 = vunpack.c.l.b16 %v1994
    %v2034 = vunpack.c.l.b16 %v1995
    %v2035 = vunpack.c.l.b16 %v1996
    %v2036 = vunpack.c.l.b16 %v1997
    %v2037 = vunpack.c.l.b16 %v1998
    %v2038 = vunpack.c.l.b16 %v1999
    %v2039 = vunpack.c.l.b16 %v2000
    %v2040 = vunpack.c.l.b16 %v2001
    %v2041 = vpack.c.b16 %v2026, %v2025
    %v2042 = vpack.c.b16 %v2028, %v2027
    %v2043 = vpack.c.b16 %v2030, %v2029
    %v2044 = vpack.c.b16 %v2032, %v2031
    %v2045 = vpack.c.b16 %v2034, %v2033
    %v2046 = vpack.c.b16 %v2036, %v2035
    %v2047 = vpack.c.b16 %v2038, %v2037
    %v2048 = vpack.c.b16 %v2040, %v2039
    %2057 = vmatprep.subr.bf16.mxu0 0
    %2058 = vmatpush1.bf16.msra.mxu0 %v2041
    %2059 = vmatprep.subr.bf16.mxu0 0
    %2060 = vmatpush1.bf16.msra.mxu0 %v2042
    %2061 = vmatprep.subr.bf16.mxu0 0
    %2062 = vmatpush1.bf16.msra.mxu0 %v2043
    %2063 = vmatprep.subr.bf16.mxu0 0
    %2064 = vmatpush1.bf16.msra.mxu0 %v2044
    %2065 = vmatprep.subr.bf16.mxu0 0
    %2066 = vmatpush1.bf16.msra.mxu0 %v2045
    %2067 = vmatprep.subr.bf16.mxu0 0
    %2068 = vmatpush1.bf16.msra.mxu0 %v2046
    %2069 = vmatprep.subr.bf16.mxu0 0
    %2070 = vmatpush1.bf16.msra.mxu0 %v2047
    %2071 = vmatprep.subr.bf16.mxu0 0
    %2072 = vmatpush1.bf16.msra.mxu0 %v2048
    %2073 = vmatprep.subr.bf16.mxu0 0
    %2074 = vmatpush1.bf16.msra.mxu0 0
    %2075 = vmatprep.subr.bf16.mxu0 0
    %2076 = vmatpush1.bf16.msra.mxu0 0
    %2077 = vmatprep.subr.bf16.mxu0 0
    %2078 = vmatpush1.bf16.msra.mxu0 0
    %2079 = vmatprep.subr.bf16.mxu0 0
    %2080 = vmatpush1.bf16.msra.mxu0 0
    %2081 = vmatprep.subr.bf16.mxu0 0
    %2082 = vmatpush1.bf16.msra.mxu0 0
    %2083 = vmatprep.subr.bf16.mxu0 0
    %2084 = vmatpush1.bf16.msra.mxu0 0
    %2085 = vmatprep.subr.bf16.mxu0 0
    %2086 = vmatpush1.bf16.msra.mxu0 0
    %2087 = vmatprep.subr.bf16.mxu0 0
    %2088 = vmatpush1.bf16.msra.mxu0 0
    %2089 = vmatprep.mubr.bf16.mxu0 0
    %2090 = vmatmul.mubr.bf16.gmra.mrb[0].mxu0 %v1985
    %v2091 = vpop.f32.mrb[0].mxu0
    %v2092 = vadd.f32 %v2007, %v2091
    %v2093 = vpop.f32.mrb[0].mxu0
    %v2094 = vpop.f32.mrb[0].mxu0
    %v2095 = vadd.f32 %v2007, %v2094
    %v2096 = vpop.f32.mrb[0].mxu0
    %2097 = vdwg.mxu0
    %v2098 = vmax.f32 %v2092, 0.0
    %v2099 = vmax.f32 %v2095, 0.0
    %v2100 = vadd.f32 %v2098, %v1753
    %v2101 = vadd.f32 %v2099, %v1754
    %v2102 = vpack.c.bf16 %v2101, %v2100
    %v2103 = vld [vmem:[#allocation13] sm:$0xf]
    %v2104 = vld [vmem:[#allocation13 + $0x4] sm:$0xf]
    %v2105 = vld [vmem:[#allocation13 + $0x8] sm:$0xf]
    %v2106 = vld [vmem:[#allocation13 + $0xc] sm:$0xf]
    %v2107 = vld [vmem:[#allocation13 + $0x10] sm:$0xf]
    %v2108 = vld [vmem:[#allocation13 + $0x14] sm:$0xf]
    %v2109 = vld [vmem:[#allocation13 + $0x18] sm:$0xf]
    %v2110 = vld [vmem:[#allocation13 + $0x1c] sm:$0xf]
    %v2111 = vld [vmem:[#allocation13 + $0x20] sm:$0xf]
    %v2112 = vld [vmem:[#allocation13 + $0x24] sm:$0xf]
    %v2113 = vld [vmem:[#allocation13 + $0x28] sm:$0xf]
    %v2114 = vld [vmem:[#allocation13 + $0x2c] sm:$0xf]
    %v2115 = vld [vmem:[#allocation13 + $0x30] sm:$0xf]
    %v2116 = vld [vmem:[#allocation13 + $0x34] sm:$0xf]
    %v2117 = vld [vmem:[#allocation13 + $0x38] sm:$0xf]
    %v2118 = vld [vmem:[#allocation13 + $0x3c] sm:$0xf]
    %v2119 = vld [vmem:[%s67] sm:$0x1]
    %v2121 = vlaneseq
    %v2122 = vshrl.u32 %v2121, 7
    %v2123 = vsub.s32 0, %v2122
    %v2124 = vrot.slane %v2119, %v2123
    %v2142 = vunpack.c.l.b16 %v2103
    %v2143 = vunpack.c.l.b16 %v2104
    %v2144 = vunpack.c.l.b16 %v2105
    %v2145 = vunpack.c.l.b16 %v2106
    %v2146 = vunpack.c.l.b16 %v2107
    %v2147 = vunpack.c.l.b16 %v2108
    %v2148 = vunpack.c.l.b16 %v2109
    %v2149 = vunpack.c.l.b16 %v2110
    %v2150 = vunpack.c.l.b16 %v2111
    %v2151 = vunpack.c.l.b16 %v2112
    %v2152 = vunpack.c.l.b16 %v2113
    %v2153 = vunpack.c.l.b16 %v2114
    %v2154 = vunpack.c.l.b16 %v2115
    %v2155 = vunpack.c.l.b16 %v2116
    %v2156 = vunpack.c.l.b16 %v2117
    %v2157 = vunpack.c.l.b16 %v2118
    %v2158 = vpack.c.b16 %v2143, %v2142
    %v2159 = vpack.c.b16 %v2145, %v2144
    %v2160 = vpack.c.b16 %v2147, %v2146
    %v2161 = vpack.c.b16 %v2149, %v2148
    %v2162 = vpack.c.b16 %v2151, %v2150
    %v2163 = vpack.c.b16 %v2153, %v2152
    %v2164 = vpack.c.b16 %v2155, %v2154
    %v2165 = vpack.c.b16 %v2157, %v2156
    %2174 = vmatprep.subr.bf16.mxu0 0
    %2175 = vmatpush1.bf16.msra.mxu0 %v2158
    %2176 = vmatprep.subr.bf16.mxu0 0
    %2177 = vmatpush1.bf16.msra.mxu0 %v2159
    %2178 = vmatprep.subr.bf16.mxu0 0
    %2179 = vmatpush1.bf16.msra.mxu0 %v2160
    %2180 = vmatprep.subr.bf16.mxu0 0
    %2181 = vmatpush1.bf16.msra.mxu0 %v2161
    %2182 = vmatprep.subr.bf16.mxu0 0
    %2183 = vmatpush1.bf16.msra.mxu0 %v2162
    %2184 = vmatprep.subr.bf16.mxu0 0
    %2185 = vmatpush1.bf16.msra.mxu0 %v2163
    %2186 = vmatprep.subr.bf16.mxu0 0
    %2187 = vmatpush1.bf16.msra.mxu0 %v2164
    %2188 = vmatprep.subr.bf16.mxu0 0
    %2189 = vmatpush1.bf16.msra.mxu0 %v2165
    %2190 = vmatprep.subr.bf16.mxu0 0
    %2191 = vmatpush1.bf16.msra.mxu0 0
    %2192 = vmatprep.subr.bf16.mxu0 0
    %2193 = vmatpush1.bf16.msra.mxu0 0
    %2194 = vmatprep.subr.bf16.mxu0 0
    %2195 = vmatpush1.bf16.msra.mxu0 0
    %2196 = vmatprep.subr.bf16.mxu0 0
    %2197 = vmatpush1.bf16.msra.mxu0 0
    %2198 = vmatprep.subr.bf16.mxu0 0
    %2199 = vmatpush1.bf16.msra.mxu0 0
    %2200 = vmatprep.subr.bf16.mxu0 0
    %2201 = vmatpush1.bf16.msra.mxu0 0
    %2202 = vmatprep.subr.bf16.mxu0 0
    %2203 = vmatpush1.bf16.msra.mxu0 0
    %2204 = vmatprep.subr.bf16.mxu0 0
    %2205 = vmatpush1.bf16.msra.mxu0 0
    %2206 = vmatprep.mubr.bf16.mxu0 0
    %2207 = vmatmul.mubr.bf16.gmra.mrb[0].mxu0 %v2102
    %v2208 = vpop.f32.mrb[0].mxu0
    %v2209 = vadd.f32 %v2124, %v2208
    %v2210 = vpop.f32.mrb[0].mxu0
    %v2211 = vpop.f32.mrb[0].mxu0
    %v2212 = vadd.f32 %v2124, %v2211
    %v2213 = vpop.f32.mrb[0].mxu0
    %2214 = vdwg.mxu0
    %v2215 = vadd.f32 %v1979, %v301
    %v2216 = vadd.f32 %v1982, %v302
    %2217 = vst [vmem:[%s69] sm:$0xff] %v2215
    %2218 = vst [vmem:[%s69 + $0x8] sm:$0xff] %v2216
    %v2219 = vadd.f32 %v2209, %v349
    %v2220 = vadd.f32 %v2212, %v350
    %2221 = vst [vmem:[%s71] sm:$0xff] %v2219
    %2222 = vst [vmem:[%s71 + $0x8] sm:$0xff] %v2220
    // Predicated region
    $region170: #{embed_block.1} parent=1 // pred_check
      _
    $region171: #{embed_block.1} parent=1 // pred_check_branch
      %2224 = sbr.rel (0) target = $region173
    $region172: #{embed_block.1} parent=1 // pred_region
      _
    $region173: #{embed_block.1} parent=1 // pred_fallthru
      _
    // Predicated region
    $region174: #{embed_block.1} parent=1 // pred_check
      _
    $region175: #{embed_block.1} parent=1 // pred_check_branch
      %2226 = sbr.rel (0) target = $region177
    $region176: #{embed_block.1} parent=1 // pred_region
      _
    $region177: #{embed_block.1} parent=1 // pred_fallthru
      _
    // Predicated region
    $region178: #{embed_block.1} parent=1 // pred_check
      _
    $region179: #{embed_block.1} parent=1 // pred_check_branch
      %2228 = sbr.rel (0) target = $region181
    $region180: #{embed_block.1} parent=1 // pred_region
      _
    $region181: #{embed_block.1} parent=1 // pred_fallthru
      _
    // Predicated region
    $region182: #{embed_block.1} parent=1 // pred_check
      _
    $region183: #{embed_block.1} parent=1 // pred_check_branch
      %2230 = sbr.rel (0) target = $region185
    $region184: #{embed_block.1} parent=1 // pred_region
      _
    $region185: #{embed_block.1} parent=1 // pred_fallthru
      _
    %2231 = vsyncpa [#allocation3], 1
    %2232 = vsyncpa [#allocation5], 1
    %2233 = vsyncpa [#allocation8], 1
    %2234 = vsyncpa [#allocation11], 1
    %2235 = vsyncpa [#allocation14], 1

</llo_original>
